<compile_context>
chip_gen: v7x
topology: tpu7x:2x2x1
jax: 0.10.0
libtpu: 0.0.40
codegen_flags: <defaults>
</compile_context>

<pallas_src>
import functools

import jax
import jax.numpy as jnp
from jax.experimental import pallas as pl
from jax.experimental.pallas import tpu as pltpu


def actor_kernel(obs_ref,
                 w1_ref, b1_ref,
                 w2_ref, b2_ref,
                 w3_ref, b3_ref,
                 wh_ref, bh_ref,
                 out_ref,
                 *, action_dim, act_dtype):
    """One batch tile: 4 matmuls (3 encoder + 1 fused head) + tanh/softplus."""
    wdt = w1_ref.dtype  # matmul operand dtype (f32 or bf16); accumulation is f32.

    def linear(x, w_ref, b_ref):
        y = jnp.dot(x.astype(wdt), w_ref[...],
                    preferred_element_type=jnp.float32)
        return y + b_ref[...]            # biases are f32

    x = obs_ref[...]
    # Elementwise chain in act_dtype (bf16 on v6e/v7x, f32 on v5e and earlier).
    h = jnp.tanh(linear(x, w1_ref, b1_ref).astype(act_dtype))   # [bt, 512]
    h = jnp.tanh(linear(h, w2_ref, b2_ref).astype(act_dtype))   # [bt, 256]
    h = jnp.tanh(linear(h, w3_ref, b3_ref).astype(act_dtype))   # [bt, 128]

    # Fused (mean | sigma | zero-pad) head: one lane-dense [bt, head_pad] tile.
    # Pad columns are exact zeros ONLY because both padded weight columns and
    # padded bias entries are zero (see prepare_actor_params).
    head = linear(h, wh_ref, bh_ref).astype(act_dtype)

    # Stable softplus: max(s,0) + log1p(exp(-|s|)).
    softplus = jnp.maximum(head, 0) + jnp.log1p(jnp.exp(-jnp.abs(head)))

    # Lane-only sigma mask (1 row), broadcast over the batch rows by where().
    col = jax.lax.broadcasted_iota(jnp.int32, (1, head.shape[1]), 1)
    is_sigma = jnp.logical_and(col >= action_dim, col < 2 * action_dim)
    out_ref[...] = jnp.where(is_sigma, softplus, head).astype(out_ref.dtype)


def _round_up8(x):
    return max(8, ((x + 7) // 8) * 8)


def _choose_batch_tile(B):
    """Big tiles (cap 1024 rows) but always >= 2 grid programs once B >= 16,
    so v7x's second TensorCore gets work and DMAs pipeline elsewhere."""
    cap = 1024
    if B < 16:
        return _round_up8(B)
    half = _round_up8(-(-B // 2))        # ceil(B/2), rounded to sublane multiple
    return min(cap, half)


def _default_elementwise_dtype(weights_dtype):
    """bf16 elementwise only on chips with a bf16 VPU/EUP (v6e / v7x)."""
    if jnp.dtype(weights_dtype) != jnp.dtype(jnp.bfloat16):
        return jnp.float32
    try:
        kind = jax.devices()[0].device_kind.lower()
    except Exception:
        return jnp.float32
    if any(tag in kind for tag in ("v2", "v3", "v4", "v5")):
        return jnp.float32               # no bf16 VPU/EUP: casts would be pure overhead
    return jnp.bfloat16


def prepare_actor_params(params, weights_dtype=jnp.bfloat16):
    """One-time weight preparation (hoisted out of the per-call path).

    Fuses the mean / sigma heads into a single [128, head_pad] lane-dense
    matmul (zero-padded weights AND biases so pad lanes stay exact zeros) and
    casts weights to `weights_dtype` (biases stay f32).
    """
    action_dim = int(params["wm"].shape[1])
    obs_dim = int(params["w1"].shape[0])
    head_pad = max(128, ((2 * action_dim + 127) // 128) * 128)

    wh = jnp.concatenate([params["wm"], params["ws"]], axis=1)   # [128, 2A]
    bh = jnp.concatenate([params["bm"], params["bs"]], axis=1)   # [1, 2A]
    wh = jnp.pad(wh, ((0, 0), (0, head_pad - wh.shape[1])))
    bh = jnp.pad(bh, ((0, 0), (0, head_pad - bh.shape[1])))

    weight_args = (
        params["w1"].astype(weights_dtype), params["b1"].astype(jnp.float32),
        params["w2"].astype(weights_dtype), params["b2"].astype(jnp.float32),
        params["w3"].astype(weights_dtype), params["b3"].astype(jnp.float32),
        wh.astype(weights_dtype), bh.astype(jnp.float32),
    )
    return {
        "weights": weight_args,
        "weights_dtype": weights_dtype,
        "action_dim": action_dim,
        "obs_dim": obs_dim,
        "head_pad": head_pad,
    }


def _weight_specs(weight_args, single_buffer):
    full_map = lambda i: (0, 0)          # grid-invariant: weights stay VMEM-resident
    specs = []
    for w in weight_args:
        if single_buffer:
            specs.append(pl.BlockSpec(w.shape, full_map,
                                      pipeline_mode=pl.Buffered(1)))
        else:
            specs.append(pl.BlockSpec(w.shape, full_map))
    return specs


def actor_forward(obs, prepared, *, batch_tile=None, elementwise_dtype=None,
                  out_dtype=jnp.float32):
    """obs: [B, obs_dim] f32.  prepared: output of prepare_actor_params.

    Returns (mean, sigma), each [B, action_dim] float32.
    `out_dtype` may be set to bf16 on bandwidth-bound chips (e.g. v5e) if the
    consumer tolerates it; default keeps the module's f32 semantics.
    """
    B, obs_dim = obs.shape
    assert obs_dim == prepared["obs_dim"]
    action_dim = prepared["action_dim"]
    head_pad = prepared["head_pad"]
    weight_args = prepared["weights"]

    if elementwise_dtype is None:
        elementwise_dtype = _default_elementwise_dtype(prepared["weights_dtype"])
    if batch_tile is None:
        batch_tile = _choose_batch_tile(B)
    batch_tile = _round_up8(batch_tile)

    # Pad the batch up to a multiple of the tile instead of shrinking the tile:
    # keeps the MXU M dimension full and the grid-step count low for awkward B.
    grid = pl.cdiv(B, batch_tile)
    b_pad = grid * batch_tile
    obs_p = jnp.pad(obs, ((0, b_pad - B), (0, 0))) if b_pad != B else obs

    kernel = functools.partial(actor_kernel, action_dim=action_dim,
                               act_dtype=elementwise_dtype)
    obs_spec = pl.BlockSpec((batch_tile, obs_dim), lambda i: (i, 0))
    out_spec = pl.BlockSpec((batch_tile, head_pad), lambda i: (i, 0))

    def run(single_buffer_weights):
        return pl.pallas_call(
            kernel,
            out_shape=jax.ShapeDtypeStruct((b_pad, head_pad), out_dtype),
            grid_spec=pltpu.PrefetchScalarGridSpec(
                num_scalar_prefetch=0,
                grid=(grid,),
                in_specs=[obs_spec] + _weight_specs(weight_args,
                                                    single_buffer_weights),
                out_specs=out_spec,
            ),
            compiler_params=pltpu.CompilerParams(
                dimension_semantics=("parallel",),
                # Covers bt=1024 f32 intermediates with headroom; below the
                # physical VMEM of every generation (incl. v7x's 64 MiB).
                vmem_limit_bytes=48 * 1024 * 1024,
            ),
        )(obs_p, *weight_args)

    try:
        out = run(True)        # grid-invariant weights -> single-buffered
    except Exception:          # pl.Buffered(1) unsupported on this jax build
        out = run(False)

    mean = out[:B, :action_dim].astype(jnp.float32)
    sigma = out[:B, action_dim:2 * action_dim].astype(jnp.float32)
    return mean, sigma


def init_params(key, obs_dim, action_dim):
    """nn.Linear-style init U(-1/sqrt(fan_in), +1/sqrt(fan_in)).
    Weights stored [in_features, out_features]; biases [1, out_features]."""
    dims = [(obs_dim, 512), (512, 256), (256, 128),
            (128, action_dim), (128, action_dim)]
    names = [("w1", "b1"), ("w2", "b2"), ("w3", "b3"), ("wm", "bm"), ("ws", "bs")]
    params = {}
    for (fan_in, fan_out), (wn, bn) in zip(dims, names):
        key, kw, kb = jax.random.split(key, 3)
        bound = 1.0 / jnp.sqrt(jnp.float32(fan_in))
        params[wn] = jax.random.uniform(kw, (fan_in, fan_out), jnp.float32, -bound, bound)
        params[bn] = jax.random.uniform(kb, (1, fan_out), jnp.float32, -bound, bound)
    return params


def actor_reference(obs, params):
    """Pure-JAX reference of the PyTorch forward, for correctness checking."""
    h = jnp.tanh(obs @ params["w1"] + params["b1"])
    h = jnp.tanh(h @ params["w2"] + params["b2"])
    h = jnp.tanh(h @ params["w3"] + params["b3"])
    mean = h @ params["wm"] + params["bm"]
    sigma = jax.nn.softplus(h @ params["ws"] + params["bs"])
    return mean, sigma


if __name__ == "__main__":
    OBS_DIM, ACTION_DIM = 16, 6

    key = jax.random.PRNGKey(0)
    key, k_obs1, k_obs2 = jax.random.split(key, 3)
    params = init_params(key, OBS_DIM, ACTION_DIM)

    # 1) f32 weights + f32 elementwise: faithful to the module, tight tolerance.
    obs = jax.random.normal(k_obs1, (8, OBS_DIM), jnp.float32)
    ref_mean, ref_sigma = actor_reference(obs, params)
    prep32 = prepare_actor_params(params, weights_dtype=jnp.float32)
    mean, sigma = actor_forward(obs, prep32, elementwise_dtype=jnp.float32)
    jax.block_until_ready((mean, sigma))
    assert mean.shape == (8, ACTION_DIM) and sigma.shape == (8, ACTION_DIM)
    assert jnp.allclose(mean, ref_mean, atol=1e-5, rtol=1e-5)
    assert jnp.allclose(sigma, ref_sigma, atol=1e-5, rtol=1e-5)
    assert bool(jnp.all(sigma > 0.0))

    # 2) awkward (non power-of-two) batch: exercises batch padding + 2-program grid.
    obs2 = jax.random.normal(k_obs2, (20, OBS_DIM), jnp.float32)
    ref_mean2, ref_sigma2 = actor_reference(obs2, params)
    mean2, sigma2 = actor_forward(obs2, prep32, elementwise_dtype=jnp.float32)
    jax.block_until_ready((mean2, sigma2))
    assert mean2.shape == (20, ACTION_DIM) and sigma2.shape == (20, ACTION_DIM)
    assert jnp.allclose(mean2, ref_mean2, atol=1e-5, rtol=1e-5)
    assert jnp.allclose(sigma2, ref_sigma2, atol=1e-5, rtol=1e-5)

    # 3) bf16 fast path (bf16 weights+activations; bf16 elementwise auto-enabled
    #    only on v6e/v7x): relaxed tolerance.
    prep16 = prepare_actor_params(params, weights_dtype=jnp.bfloat16)
    mean16, sigma16 = actor_forward(obs, prep16)
    jax.block_until_ready((mean16, sigma16))
    assert jnp.allclose(mean16, ref_mean, atol=5e-2, rtol=5e-2)
    assert jnp.allclose(sigma16, ref_sigma, atol=5e-2, rtol=5e-2)

    print("KERNEL_OK")
</pallas_src>

<mosaic_0001>
module attributes {stable_mosaic.version = 11 : i64} {
  func.func @actor_kernel(%arg0: i32, %arg1: memref<8x16xf32, #tpu.memory_space<vmem>>, %arg2: memref<16x512xf32, #tpu.memory_space<vmem>>, %arg3: memref<1x512xf32, #tpu.memory_space<vmem>>, %arg4: memref<512x256xf32, #tpu.memory_space<vmem>>, %arg5: memref<1x256xf32, #tpu.memory_space<vmem>>, %arg6: memref<256x128xf32, #tpu.memory_space<vmem>>, %arg7: memref<1x128xf32, #tpu.memory_space<vmem>>, %arg8: memref<128x128xf32, #tpu.memory_space<vmem>>, %arg9: memref<1x128xf32, #tpu.memory_space<vmem>>, %arg10: memref<8x128xf32, #tpu.memory_space<vmem>>) attributes {dimension_semantics = [#tpu.dimension_semantics<parallel>], iteration_bounds = array<i64: 1>, scalar_prefetch = 0 : i64, scratch_operands = 0 : i64, tpu.core_type = #tpu.core_type<tc>, window_params = [{transform_indices = @transform_0, window_bounds = array<i64: 8, 16>}, {pipeline_mode = #tpu.pipeline_mode<synchronous>, transform_indices = @transform_1, window_bounds = array<i64: 16, 512>}, {pipeline_mode = #tpu.pipeline_mode<synchronous>, transform_indices = @transform_2, window_bounds = array<i64: 1, 512>}, {pipeline_mode = #tpu.pipeline_mode<synchronous>, transform_indices = @transform_3, window_bounds = array<i64: 512, 256>}, {pipeline_mode = #tpu.pipeline_mode<synchronous>, transform_indices = @transform_4, window_bounds = array<i64: 1, 256>}, {pipeline_mode = #tpu.pipeline_mode<synchronous>, transform_indices = @transform_5, window_bounds = array<i64: 256, 128>}, {pipeline_mode = #tpu.pipeline_mode<synchronous>, transform_indices = @transform_6, window_bounds = array<i64: 1, 128>}, {pipeline_mode = #tpu.pipeline_mode<synchronous>, transform_indices = @transform_7, window_bounds = array<i64: 128, 128>}, {pipeline_mode = #tpu.pipeline_mode<synchronous>, transform_indices = @transform_8, window_bounds = array<i64: 1, 128>}, {transform_indices = @transform_9, window_bounds = array<i64: 8, 128>}]} {
    %c0 = arith.constant 0 : index
    %c0_0 = arith.constant 0 : index
    %0 = vector.load %arg1[%c0, %c0_0] : memref<8x16xf32, #tpu.memory_space<vmem>>, vector<8x16xf32>
    %c0_1 = arith.constant 0 : index
    %c0_2 = arith.constant 0 : index
    %1 = vector.load %arg2[%c0_1, %c0_2] : memref<16x512xf32, #tpu.memory_space<vmem>>, vector<16x512xf32>
    %cst = arith.constant dense<0.000000e+00> : vector<8x512xf32>
    %2 = tpu.matmul %0, %1, %cst {dimension_numbers = #tpu.dot_dimension_numbers<[1], [0], [0], [1], [0, 0, 1, 1], [], []>} : vector<8x16xf32>, vector<16x512xf32>, vector<8x512xf32> -> vector<8x512xf32>
    %c0_3 = arith.constant 0 : index
    %c0_4 = arith.constant 0 : index
    %3 = vector.load %arg3[%c0_3, %c0_4] : memref<1x512xf32, #tpu.memory_space<vmem>>, vector<1x512xf32>
    %4 = vector.broadcast %3 : vector<1x512xf32> to vector<8x512xf32>
    %5 = arith.addf %2, %4 : vector<8x512xf32>
    %6 = math.tanh %5 : vector<8x512xf32>
    %c0_5 = arith.constant 0 : index
    %c0_6 = arith.constant 0 : index
    %7 = vector.load %arg4[%c0_5, %c0_6] : memref<512x256xf32, #tpu.memory_space<vmem>>, vector<512x256xf32>
    %cst_7 = arith.constant dense<0.000000e+00> : vector<8x256xf32>
    %8 = tpu.matmul %6, %7, %cst_7 {dimension_numbers = #tpu.dot_dimension_numbers<[1], [0], [0], [1], [0, 0, 1, 1], [], []>} : vector<8x512xf32>, vector<512x256xf32>, vector<8x256xf32> -> vector<8x256xf32>
    %c0_8 = arith.constant 0 : index
    %c0_9 = arith.constant 0 : index
    %9 = vector.load %arg5[%c0_8, %c0_9] : memref<1x256xf32, #tpu.memory_space<vmem>>, vector<1x256xf32>
    %10 = vector.broadcast %9 : vector<1x256xf32> to vector<8x256xf32>
    %11 = arith.addf %8, %10 : vector<8x256xf32>
    %12 = math.tanh %11 : vector<8x256xf32>
    %c0_10 = arith.constant 0 : index
    %c0_11 = arith.constant 0 : index
    %13 = vector.load %arg6[%c0_10, %c0_11] : memref<256x128xf32, #tpu.memory_space<vmem>>, vector<256x128xf32>
    %cst_12 = arith.constant dense<0.000000e+00> : vector<8x128xf32>
    %14 = tpu.matmul %12, %13, %cst_12 {dimension_numbers = #tpu.dot_dimension_numbers<[1], [0], [0], [1], [0, 0, 1, 1], [], []>} : vector<8x256xf32>, vector<256x128xf32>, vector<8x128xf32> -> vector<8x128xf32>
    %c0_13 = arith.constant 0 : index
    %c0_14 = arith.constant 0 : index
    %15 = vector.load %arg7[%c0_13, %c0_14] : memref<1x128xf32, #tpu.memory_space<vmem>>, vector<1x128xf32>
    %16 = vector.broadcast %15 : vector<1x128xf32> to vector<8x128xf32>
    %17 = arith.addf %14, %16 : vector<8x128xf32>
    %18 = math.tanh %17 : vector<8x128xf32>
    %c0_15 = arith.constant 0 : index
    %c0_16 = arith.constant 0 : index
    %19 = vector.load %arg8[%c0_15, %c0_16] : memref<128x128xf32, #tpu.memory_space<vmem>>, vector<128x128xf32>
    %cst_17 = arith.constant dense<0.000000e+00> : vector<8x128xf32>
    %20 = tpu.matmul %18, %19, %cst_17 {dimension_numbers = #tpu.dot_dimension_numbers<[1], [0], [0], [1], [0, 0, 1, 1], [], []>} : vector<8x128xf32>, vector<128x128xf32>, vector<8x128xf32> -> vector<8x128xf32>
    %c0_18 = arith.constant 0 : index
    %c0_19 = arith.constant 0 : index
    %21 = vector.load %arg9[%c0_18, %c0_19] : memref<1x128xf32, #tpu.memory_space<vmem>>, vector<1x128xf32>
    %22 = vector.broadcast %21 : vector<1x128xf32> to vector<8x128xf32>
    %23 = arith.addf %20, %22 : vector<8x128xf32>
    %cst_20 = arith.constant 0.000000e+00 : f32
    %24 = vector.broadcast %cst_20 : f32 to vector<8x128xf32>
    %25 = arith.maximumf %23, %24 : vector<8x128xf32>
    %26 = math.absf %23 : vector<8x128xf32>
    %cst_21 = arith.constant 0.000000e+00 : f32
    %27 = vector.broadcast %cst_21 : f32 to vector<8x128xf32>
    %28 = arith.subf %27, %26 : vector<8x128xf32>
    %29 = math.exp %28 : vector<8x128xf32>
    %30 = math.log1p %29 : vector<8x128xf32>
    %31 = arith.addf %25, %30 : vector<8x128xf32>
    %32 = tpu.iota {dimensions = array<i32: 1>} : vector<1x128xi32>
    %c6_i32 = arith.constant 6 : i32
    %33 = vector.broadcast %c6_i32 : i32 to vector<1x128xi32>
    %34 = arith.cmpi sge, %32, %33 : vector<1x128xi32>
    %c12_i32 = arith.constant 12 : i32
    %35 = vector.broadcast %c12_i32 : i32 to vector<1x128xi32>
    %36 = arith.cmpi slt, %32, %35 : vector<1x128xi32>
    %37 = arith.andi %34, %36 : vector<1x128xi1>
    %38 = vector.shape_cast %37 : vector<1x128xi1> to vector<1x128xi1>
    %39 = vector.broadcast %38 : vector<1x128xi1> to vector<8x128xi1>
    %40 = arith.select %39, %31, %23 : vector<8x128xi1>, vector<8x128xf32>
    %c0_22 = arith.constant 0 : index
    %c0_23 = arith.constant 0 : index
    %41 = vector.load %arg10[%c0_22, %c0_23] : memref<8x128xf32, #tpu.memory_space<vmem>>, vector<8x128xf32>
    tpu.vector_store %arg10[%c0_22, %c0_23], %40 {strides = array<i32>} : memref<8x128xf32, #tpu.memory_space<vmem>>, vector<8x128xf32>,
    return
  }
  func.func @transform_0(%arg0: i32) -> (i32, i32) {
    %c0_i32 = arith.constant 0 : i32
    %c0_i32_0 = arith.constant 0 : i32
    return %arg0, %c0_i32 : i32, i32
  }
  func.func @transform_1(%arg0: i32) -> (i32, i32) {
    %c0_i32 = arith.constant 0 : i32
    %c0_i32_0 = arith.constant 0 : i32
    %c0_i32_1 = arith.constant 0 : i32
    return %c0_i32, %c0_i32_0 : i32, i32
  }
  func.func @transform_2(%arg0: i32) -> (i32, i32) {
    %c0_i32 = arith.constant 0 : i32
    %c0_i32_0 = arith.constant 0 : i32
    %c0_i32_1 = arith.constant 0 : i32
    return %c0_i32, %c0_i32_0 : i32, i32
  }
  func.func @transform_3(%arg0: i32) -> (i32, i32) {
    %c0_i32 = arith.constant 0 : i32
    %c0_i32_0 = arith.constant 0 : i32
    %c0_i32_1 = arith.constant 0 : i32
    return %c0_i32, %c0_i32_0 : i32, i32
  }
  func.func @transform_4(%arg0: i32) -> (i32, i32) {
    %c0_i32 = arith.constant 0 : i32
    %c0_i32_0 = arith.constant 0 : i32
    %c0_i32_1 = arith.constant 0 : i32
    return %c0_i32, %c0_i32_0 : i32, i32
  }
  func.func @transform_5(%arg0: i32) -> (i32, i32) {
    %c0_i32 = arith.constant 0 : i32
    %c0_i32_0 = arith.constant 0 : i32
    %c0_i32_1 = arith.constant 0 : i32
    return %c0_i32, %c0_i32_0 : i32, i32
  }
  func.func @transform_6(%arg0: i32) -> (i32, i32) {
    %c0_i32 = arith.constant 0 : i32
    %c0_i32_0 = arith.constant 0 : i32
    %c0_i32_1 = arith.constant 0 : i32
    return %c0_i32, %c0_i32_0 : i32, i32
  }
  func.func @transform_7(%arg0: i32) -> (i32, i32) {
    %c0_i32 = arith.constant 0 : i32
    %c0_i32_0 = arith.constant 0 : i32
    %c0_i32_1 = arith.constant 0 : i32
    return %c0_i32, %c0_i32_0 : i32, i32
  }
  func.func @transform_8(%arg0: i32) -> (i32, i32) {
    %c0_i32 = arith.constant 0 : i32
    %c0_i32_0 = arith.constant 0 : i32
    %c0_i32_1 = arith.constant 0 : i32
    return %c0_i32, %c0_i32_0 : i32, i32
  }
  func.func @transform_9(%arg0: i32) -> (i32, i32) {
    %c0_i32 = arith.constant 0 : i32
    %c0_i32_0 = arith.constant 0 : i32
    return %arg0, %c0_i32 : i32, i32
  }
}

module attributes {stable_mosaic.version = 11 : i64} {
  func.func @actor_kernel(%arg0: i32, %arg1: memref<8x16xf32, #tpu.memory_space<vmem>>, %arg2: memref<16x512xf32, #tpu.memory_space<vmem>>, %arg3: memref<1x512xf32, #tpu.memory_space<vmem>>, %arg4: memref<512x256xf32, #tpu.memory_space<vmem>>, %arg5: memref<1x256xf32, #tpu.memory_space<vmem>>, %arg6: memref<256x128xf32, #tpu.memory_space<vmem>>, %arg7: memref<1x128xf32, #tpu.memory_space<vmem>>, %arg8: memref<128x128xf32, #tpu.memory_space<vmem>>, %arg9: memref<1x128xf32, #tpu.memory_space<vmem>>, %arg10: memref<8x128xf32, #tpu.memory_space<vmem>>) attributes {dimension_semantics = [#tpu.dimension_semantics<parallel>], iteration_bounds = array<i64: 1>, scalar_prefetch = 0 : i64, scratch_operands = 0 : i64, tpu.core_type = #tpu.core_type<tc>, window_params = [{transform_indices = @transform_0, window_bounds = array<i64: 8, 16>}, {pipeline_mode = #tpu.pipeline_mode<synchronous>, transform_indices = @transform_1, window_bounds = array<i64: 16, 512>}, {pipeline_mode = #tpu.pipeline_mode<synchronous>, transform_indices = @transform_2, window_bounds = array<i64: 1, 512>}, {pipeline_mode = #tpu.pipeline_mode<synchronous>, transform_indices = @transform_3, window_bounds = array<i64: 512, 256>}, {pipeline_mode = #tpu.pipeline_mode<synchronous>, transform_indices = @transform_4, window_bounds = array<i64: 1, 256>}, {pipeline_mode = #tpu.pipeline_mode<synchronous>, transform_indices = @transform_5, window_bounds = array<i64: 256, 128>}, {pipeline_mode = #tpu.pipeline_mode<synchronous>, transform_indices = @transform_6, window_bounds = array<i64: 1, 128>}, {pipeline_mode = #tpu.pipeline_mode<synchronous>, transform_indices = @transform_7, window_bounds = array<i64: 128, 128>}, {pipeline_mode = #tpu.pipeline_mode<synchronous>, transform_indices = @transform_8, window_bounds = array<i64: 1, 128>}, {transform_indices = @transform_9, window_bounds = array<i64: 8, 128>}]} {
    %c0 = arith.constant 0 : index
    %c0_0 = arith.constant 0 : index
    %0 = vector.load %arg1[%c0, %c0_0] : memref<8x16xf32, #tpu.memory_space<vmem>>, vector<8x16xf32>
    %c0_1 = arith.constant 0 : index
    %c0_2 = arith.constant 0 : index
    %1 = vector.load %arg2[%c0_1, %c0_2] : memref<16x512xf32, #tpu.memory_space<vmem>>, vector<16x512xf32>
    %cst = arith.constant dense<0.000000e+00> : vector<8x512xf32>
    %2 = tpu.matmul %0, %1, %cst {dimension_numbers = #tpu.dot_dimension_numbers<[1], [0], [0], [1], [0, 0, 1, 1], [], []>} : vector<8x16xf32>, vector<16x512xf32>, vector<8x512xf32> -> vector<8x512xf32>
    %c0_3 = arith.constant 0 : index
    %c0_4 = arith.constant 0 : index
    %3 = vector.load %arg3[%c0_3, %c0_4] : memref<1x512xf32, #tpu.memory_space<vmem>>, vector<1x512xf32>
    %4 = vector.broadcast %3 : vector<1x512xf32> to vector<8x512xf32>
    %5 = arith.addf %2, %4 : vector<8x512xf32>
    %6 = math.tanh %5 : vector<8x512xf32>
    %c0_5 = arith.constant 0 : index
    %c0_6 = arith.constant 0 : index
    %7 = vector.load %arg4[%c0_5, %c0_6] : memref<512x256xf32, #tpu.memory_space<vmem>>, vector<512x256xf32>
    %cst_7 = arith.constant dense<0.000000e+00> : vector<8x256xf32>
    %8 = tpu.matmul %6, %7, %cst_7 {dimension_numbers = #tpu.dot_dimension_numbers<[1], [0], [0], [1], [0, 0, 1, 1], [], []>} : vector<8x512xf32>, vector<512x256xf32>, vector<8x256xf32> -> vector<8x256xf32>
    %c0_8 = arith.constant 0 : index
    %c0_9 = arith.constant 0 : index
    %9 = vector.load %arg5[%c0_8, %c0_9] : memref<1x256xf32, #tpu.memory_space<vmem>>, vector<1x256xf32>
    %10 = vector.broadcast %9 : vector<1x256xf32> to vector<8x256xf32>
    %11 = arith.addf %8, %10 : vector<8x256xf32>
    %12 = math.tanh %11 : vector<8x256xf32>
    %c0_10 = arith.constant 0 : index
    %c0_11 = arith.constant 0 : index
    %13 = vector.load %arg6[%c0_10, %c0_11] : memref<256x128xf32, #tpu.memory_space<vmem>>, vector<256x128xf32>
    %cst_12 = arith.constant dense<0.000000e+00> : vector<8x128xf32>
    %14 = tpu.matmul %12, %13, %cst_12 {dimension_numbers = #tpu.dot_dimension_numbers<[1], [0], [0], [1], [0, 0, 1, 1], [], []>} : vector<8x256xf32>, vector<256x128xf32>, vector<8x128xf32> -> vector<8x128xf32>
    %c0_13 = arith.constant 0 : index
    %c0_14 = arith.constant 0 : index
    %15 = vector.load %arg7[%c0_13, %c0_14] : memref<1x128xf32, #tpu.memory_space<vmem>>, vector<1x128xf32>
    %16 = vector.broadcast %15 : vector<1x128xf32> to vector<8x128xf32>
    %17 = arith.addf %14, %16 : vector<8x128xf32>
    %18 = math.tanh %17 : vector<8x128xf32>
    %c0_15 = arith.constant 0 : index
    %c0_16 = arith.constant 0 : index
    %19 = vector.load %arg8[%c0_15, %c0_16] : memref<128x128xf32, #tpu.memory_space<vmem>>, vector<128x128xf32>
    %cst_17 = arith.constant dense<0.000000e+00> : vector<8x128xf32>
    %20 = tpu.matmul %18, %19, %cst_17 {dimension_numbers = #tpu.dot_dimension_numbers<[1], [0], [0], [1], [0, 0, 1, 1], [], []>} : vector<8x128xf32>, vector<128x128xf32>, vector<8x128xf32> -> vector<8x128xf32>
    %c0_18 = arith.constant 0 : index
    %c0_19 = arith.constant 0 : index
    %21 = vector.load %arg9[%c0_18, %c0_19] : memref<1x128xf32, #tpu.memory_space<vmem>>, vector<1x128xf32>
    %22 = vector.broadcast %21 : vector<1x128xf32> to vector<8x128xf32>
    %23 = arith.addf %20, %22 : vector<8x128xf32>
    %cst_20 = arith.constant 0.000000e+00 : f32
    %24 = vector.broadcast %cst_20 : f32 to vector<8x128xf32>
    %25 = arith.maximumf %23, %24 : vector<8x128xf32>
    %26 = math.absf %23 : vector<8x128xf32>
    %cst_21 = arith.constant 0.000000e+00 : f32
    %27 = vector.broadcast %cst_21 : f32 to vector<8x128xf32>
    %28 = arith.subf %27, %26 : vector<8x128xf32>
    %29 = math.exp %28 : vector<8x128xf32>
    %30 = math.log1p %29 : vector<8x128xf32>
    %31 = arith.addf %25, %30 : vector<8x128xf32>
    %32 = tpu.iota {dimensions = array<i32: 1>} : vector<1x128xi32>
    %c6_i32 = arith.constant 6 : i32
    %33 = vector.broadcast %c6_i32 : i32 to vector<1x128xi32>
    %34 = arith.cmpi sge, %32, %33 : vector<1x128xi32>
    %c12_i32 = arith.constant 12 : i32
    %35 = vector.broadcast %c12_i32 : i32 to vector<1x128xi32>
    %36 = arith.cmpi slt, %32, %35 : vector<1x128xi32>
    %37 = arith.andi %34, %36 : vector<1x128xi1>
    %38 = vector.shape_cast %37 : vector<1x128xi1> to vector<1x128xi1>
    %39 = vector.broadcast %38 : vector<1x128xi1> to vector<8x128xi1>
    %40 = arith.select %39, %31, %23 : vector<8x128xi1>, vector<8x128xf32>
    %c0_22 = arith.constant 0 : index
    %c0_23 = arith.constant 0 : index
    %41 = vector.load %arg10[%c0_22, %c0_23] : memref<8x128xf32, #tpu.memory_space<vmem>>, vector<8x128xf32>
    tpu.vector_store %arg10[%c0_22, %c0_23], %40 {strides = array<i32>} : memref<8x128xf32, #tpu.memory_space<vmem>>, vector<8x128xf32>,
    return
  }
  func.func @transform_0(%arg0: i32) -> (i32, i32) {
    %c0_i32 = arith.constant 0 : i32
    %c0_i32_0 = arith.constant 0 : i32
    return %arg0, %c0_i32 : i32, i32
  }
  func.func @transform_1(%arg0: i32) -> (i32, i32) {
    %c0_i32 = arith.constant 0 : i32
    %c0_i32_0 = arith.constant 0 : i32
    %c0_i32_1 = arith.constant 0 : i32
    return %c0_i32, %c0_i32_0 : i32, i32
  }
  func.func @transform_2(%arg0: i32) -> (i32, i32) {
    %c0_i32 = arith.constant 0 : i32
    %c0_i32_0 = arith.constant 0 : i32
    %c0_i32_1 = arith.constant 0 : i32
    return %c0_i32, %c0_i32_0 : i32, i32
  }
  func.func @transform_3(%arg0: i32) -> (i32, i32) {
    %c0_i32 = arith.constant 0 : i32
    %c0_i32_0 = arith.constant 0 : i32
    %c0_i32_1 = arith.constant 0 : i32
    return %c0_i32, %c0_i32_0 : i32, i32
  }
  func.func @transform_4(%arg0: i32) -> (i32, i32) {
    %c0_i32 = arith.constant 0 : i32
    %c0_i32_0 = arith.constant 0 : i32
    %c0_i32_1 = arith.constant 0 : i32
    return %c0_i32, %c0_i32_0 : i32, i32
  }
  func.func @transform_5(%arg0: i32) -> (i32, i32) {
    %c0_i32 = arith.constant 0 : i32
    %c0_i32_0 = arith.constant 0 : i32
    %c0_i32_1 = arith.constant 0 : i32
    return %c0_i32, %c0_i32_0 : i32, i32
  }
  func.func @transform_6(%arg0: i32) -> (i32, i32) {
    %c0_i32 = arith.constant 0 : i32
    %c0_i32_0 = arith.constant 0 : i32
    %c0_i32_1 = arith.constant 0 : i32
    return %c0_i32, %c0_i32_0 : i32, i32
  }
  func.func @transform_7(%arg0: i32) -> (i32, i32) {
    %c0_i32 = arith.constant 0 : i32
    %c0_i32_0 = arith.constant 0 : i32
    %c0_i32_1 = arith.constant 0 : i32
    return %c0_i32, %c0_i32_0 : i32, i32
  }
  func.func @transform_8(%arg0: i32) -> (i32, i32) {
    %c0_i32 = arith.constant 0 : i32
    %c0_i32_0 = arith.constant 0 : i32
    %c0_i32_1 = arith.constant 0 : i32
    return %c0_i32, %c0_i32_0 : i32, i32
  }
  func.func @transform_9(%arg0: i32) -> (i32, i32) {
    %c0_i32 = arith.constant 0 : i32
    %c0_i32_0 = arith.constant 0 : i32
    return %arg0, %c0_i32 : i32, i32
  }
}

</mosaic_0001>

<llo_original>
// kernel: tpu_custom_call.1
$region0: #{tpu_custom_call.1}
  #allocation0 [shape = 'u32[]', space=smem, size = 0x4, offset = 0x4, fixed_abs, tag = 'smem constant byte address 0x4 - core index']
  #allocation1 [shape = 'u32[144,128]{1,0:T(1,128)}', space=vmem, size = 0x12000, scoped, tag = 'internal scratch']
  %s0 = inlined_call_operand.hbm [shape: f32[8,16], index: 0, kind: input, shape index: {}]
  %s1 = inlined_call_operand.hbm [shape: f32[16,512], index: 1, kind: input, shape index: {}]
  %s2 = inlined_call_operand.vmem [shape: f32[1,512], index: 2, kind: input, shape index: {}]
  %s3 = inlined_call_operand.hbm [shape: f32[512,256], index: 3, kind: input, shape index: {}]
  %s4 = inlined_call_operand.vmem [shape: f32[1,256], index: 4, kind: input, shape index: {}]
  %s5 = inlined_call_operand.hbm [shape: f32[256,128], index: 5, kind: input, shape index: {}]
  %s6 = inlined_call_operand.vmem [shape: f32[1,128], index: 6, kind: input, shape index: {}]
  %s7 = inlined_call_operand.hbm [shape: f32[128,128], index: 7, kind: input, shape index: {}]
  %s8 = inlined_call_operand.vmem [shape: f32[1,128], index: 8, kind: input, shape index: {}]
  %s9 = inlined_call_operand.hbm [shape: f32[8,128], index: 9, kind: output, shape index: {}]
  %s10 = sld [smem:[#allocation0]]
  $region66: #{tpu_custom_call.1} parent=0
    _
  %s12 = ssub.s32 1, %s10
  %s13 = scalar_select 0, %s12, %s10
  $region1: #{tpu_custom_call.1} parent=0
    #allocation2 [shape = 'u8[4096]{0}', space=vmem, size = 0x1000, scoped, tag = 'input window, operand 0, single buffered']
    #allocation3 [shape = 's32[1]{0}', space=sflag, size = 0x4, scoped, tag = 'scoped memory for tpu_custom_call.1']
    #allocation4 [shape = 's32[1]{0}', space=sflag, size = 0x4, scoped, tag = 'scoped memory for tpu_custom_call.1']
    #allocation5 [shape = 'u8[32768]{0}', space=vmem, size = 0x8000, scoped, tag = 'input window, operand 1, single buffered']
    #allocation6 [shape = 's32[1]{0}', space=sflag, size = 0x4, scoped, tag = 'scoped memory for tpu_custom_call.1']
    #allocation7 [shape = 'u8[524288]{0}', space=vmem, size = 0x80000, scoped, tag = 'input window, operand 3, single buffered']
    #allocation8 [shape = 'u8[131072]{0}', space=vmem, size = 0x20000, scoped, tag = 'input window, operand 5, single buffered']
    #allocation9 [shape = 's32[1]{0}', space=sflag, size = 0x4, scoped, tag = 'scoped memory for tpu_custom_call.1']
    #allocation10 [shape = 'u8[65536]{0}', space=vmem, size = 0x10000, scoped, tag = 'input window, operand 7, single buffered']
    #allocation11 [shape = 'u8[4096]{0}', space=vmem, size = 0x1000, scoped, tag = 'output window, operand 0, single buffered']
    %14 = vsyncpa [#allocation3], 0
    %15 = vsyncpa [#allocation6], 0
    %16 = vsyncpa [#allocation9], 0
    %17 = vsyncpa [#allocation4], 0
    // Predicated region
    $region2: #{tpu_custom_call.1} parent=1 // pred_check
      _
    $region3: #{tpu_custom_call.1} parent=1 // pred_check_branch
      %19 = sbr.rel (0) target = $region5
    $region4: #{tpu_custom_call.1} parent=1 // pred_region
      %s21 = ssub.s32 128, 128
      %22 = vsyncadd [#allocation3], %s21
      %s24 = sshll.u32 [#allocation2], 4
      %s25 = int_to_ptr.vmem [resolvable:$true] %s24
      %27 = dma.hbm_to_vmem [thread:$0]  %s0, 128, %s25, [#allocation3]
    $region5: #{tpu_custom_call.1} parent=1 // pred_fallthru
      _
    // Predicated region
    $region6: #{tpu_custom_call.1} parent=1 // pred_check
      _
    $region7: #{tpu_custom_call.1} parent=1 // pred_check_branch
      %29 = sbr.rel (0) target = $region9
    $region8: #{tpu_custom_call.1} parent=1 // pred_region
      %s31 = ssub.s32 1024, 1024
      %32 = vsyncadd [#allocation6], %s31
      %s33 = sshll.u32 [#allocation5], 4
      %s34 = int_to_ptr.vmem [resolvable:$true] %s33
      %39 = dma.hbm_to_vmem [thread:$0]  %s1, 1024, %s34, [#allocation6], 512, 512, 32
    $region9: #{tpu_custom_call.1} parent=1 // pred_fallthru
      _
    // Predicated region
    $region10: #{tpu_custom_call.1} parent=1 // pred_check
      _
    $region11: #{tpu_custom_call.1} parent=1 // pred_check_branch
      %41 = sbr.rel (0) target = $region13
    $region12: #{tpu_custom_call.1} parent=1 // pred_region
      _
    $region13: #{tpu_custom_call.1} parent=1 // pred_fallthru
      _
    // Predicated region
    $region14: #{tpu_custom_call.1} parent=1 // pred_check
      _
    $region15: #{tpu_custom_call.1} parent=1 // pred_check_branch
      %43 = sbr.rel (0) target = $region17
    $region16: #{tpu_custom_call.1} parent=1 // pred_region
      %s45 = ssub.s32 16384, 16384
      %46 = vsyncadd [#allocation6], %s45
      %s47 = sshll.u32 [#allocation7], 4
      %s48 = int_to_ptr.vmem [resolvable:$true] %s47
      %53 = dma.hbm_to_vmem [thread:$0]  %s3, 16384, %s48, [#allocation6], 256, 256, 16
    $region17: #{tpu_custom_call.1} parent=1 // pred_fallthru
      _
    // Predicated region
    $region18: #{tpu_custom_call.1} parent=1 // pred_check
      _
    $region19: #{tpu_custom_call.1} parent=1 // pred_check_branch
      %55 = sbr.rel (0) target = $region21
    $region20: #{tpu_custom_call.1} parent=1 // pred_region
      _
    $region21: #{tpu_custom_call.1} parent=1 // pred_fallthru
      _
    // Predicated region
    $region22: #{tpu_custom_call.1} parent=1 // pred_check
      _
    $region23: #{tpu_custom_call.1} parent=1 // pred_check_branch
      %57 = sbr.rel (0) target = $region25
    $region24: #{tpu_custom_call.1} parent=1 // pred_region
      %s59 = ssub.s32 4096, 4096
      %60 = vsyncadd [#allocation9], %s59
      %s61 = sshll.u32 [#allocation8], 4
      %s62 = int_to_ptr.vmem [resolvable:$true] %s61
      %67 = dma.hbm_to_vmem [thread:$0]  %s5, 4096, %s62, [#allocation9], 128, 128, 8
    $region25: #{tpu_custom_call.1} parent=1 // pred_fallthru
      _
    // Predicated region
    $region26: #{tpu_custom_call.1} parent=1 // pred_check
      _
    $region27: #{tpu_custom_call.1} parent=1 // pred_check_branch
      %69 = sbr.rel (0) target = $region29
    $region28: #{tpu_custom_call.1} parent=1 // pred_region
      _
    $region29: #{tpu_custom_call.1} parent=1 // pred_fallthru
      _
    // Predicated region
    $region30: #{tpu_custom_call.1} parent=1 // pred_check
      _
    $region31: #{tpu_custom_call.1} parent=1 // pred_check_branch
      %71 = sbr.rel (0) target = $region33
    $region32: #{tpu_custom_call.1} parent=1 // pred_region
      %s73 = ssub.s32 2048, 2048
      %74 = vsyncadd [#allocation9], %s73
      %s75 = sshll.u32 [#allocation10], 4
      %s76 = int_to_ptr.vmem [resolvable:$true] %s75
      %81 = dma.hbm_to_vmem [thread:$0]  %s7, 2048, %s76, [#allocation9], 128, 128, 8
    $region33: #{tpu_custom_call.1} parent=1 // pred_fallthru
      _
    // Predicated region
    $region34: #{tpu_custom_call.1} parent=1 // pred_check
      _
    $region35: #{tpu_custom_call.1} parent=1 // pred_check_branch
      %83 = sbr.rel (0) target = $region37
    $region36: #{tpu_custom_call.1} parent=1 // pred_region
      _
    $region37: #{tpu_custom_call.1} parent=1 // pred_fallthru
      _
    // Predicated region
    $region38: #{tpu_custom_call.1} parent=1 // pred_check
      _
    $region39: #{tpu_custom_call.1} parent=1 // pred_check_branch
      %85 = sbr.rel (0) target = $region41
    $region40: #{tpu_custom_call.1} parent=1 // pred_region
      %86 = dma.done [#allocation3], 128
    $region41: #{tpu_custom_call.1} parent=1 // pred_fallthru
      _
    // Predicated region
    $region42: #{tpu_custom_call.1} parent=1 // pred_check
      _
    $region43: #{tpu_custom_call.1} parent=1 // pred_check_branch
      %88 = sbr.rel (0) target = $region45
    $region44: #{tpu_custom_call.1} parent=1 // pred_region
      %89 = dma.done [#allocation6], 1024
    $region45: #{tpu_custom_call.1} parent=1 // pred_fallthru
      _
    // Predicated region
    $region46: #{tpu_custom_call.1} parent=1 // pred_check
      _
    $region47: #{tpu_custom_call.1} parent=1 // pred_check_branch
      %91 = sbr.rel (0) target = $region49
    $region48: #{tpu_custom_call.1} parent=1 // pred_region
      %92 = dma.done [#allocation6], 16384
    $region49: #{tpu_custom_call.1} parent=1 // pred_fallthru
      _
    // Predicated region
    $region50: #{tpu_custom_call.1} parent=1 // pred_check
      _
    $region51: #{tpu_custom_call.1} parent=1 // pred_check_branch
      %94 = sbr.rel (0) target = $region53
    $region52: #{tpu_custom_call.1} parent=1 // pred_region
      %95 = dma.done [#allocation9], 4096
    $region53: #{tpu_custom_call.1} parent=1 // pred_fallthru
      _
    // Predicated region
    $region54: #{tpu_custom_call.1} parent=1 // pred_check
      _
    $region55: #{tpu_custom_call.1} parent=1 // pred_check_branch
      %97 = sbr.rel (0) target = $region57
    $region56: #{tpu_custom_call.1} parent=1 // pred_region
      %98 = dma.done [#allocation9], 2048
    $region57: #{tpu_custom_call.1} parent=1 // pred_fallthru
      _
    %v99 = vld [vmem:[#allocation2] sm:$0xff]
    %v100 = vld [vmem:[#allocation5] sm:$0xff]
    %v101 = vld [vmem:[#allocation5 + $0x8] sm:$0xff]
    %v102 = vld [vmem:[#allocation5 + $0x10] sm:$0xff]
    %v103 = vld [vmem:[#allocation5 + $0x18] sm:$0xff]
    %v104 = vld [vmem:[#allocation5 + $0x20] sm:$0xff]
    %v105 = vld [vmem:[#allocation5 + $0x28] sm:$0xff]
    %v106 = vld [vmem:[#allocation5 + $0x30] sm:$0xff]
    %v107 = vld [vmem:[#allocation5 + $0x38] sm:$0xff]
    %v108 = vld [vmem:[%s2] sm:$0xf]
    %v110 = vlaneseq
    %v111 = vshrl.u32 %v110, 7
    %v112 = vsub.s32 0, %v111
    %v113 = vrot.slane %v108, %v112
    %v114 = vlaneseq
    %v115 = vshrl.u32 %v114, 7
    %v116 = vsub.s32 1, %v115
    %v117 = vrot.slane %v108, %v116
    %v118 = vlaneseq
    %v119 = vshrl.u32 %v118, 7
    %v120 = vsub.s32 2, %v119
    %v121 = vrot.slane %v108, %v120
    %v122 = vlaneseq
    %v123 = vshrl.u32 %v122, 7
    %v124 = vsub.s32 3, %v123
    %v125 = vrot.slane %v108, %v124
    %vm130 = vcmask 130048
    %v132 = vsel %vm130, %v99, 0
    %134 = vmatprep.subr.mxu0 %v101
    %135 = vmatpush1.msra.mxu0 %v100
    %136 = vmatprep.subr.mxu0 %v105
    %137 = vmatpush1.msra.mxu0 %v104
    %138 = vmatprep.subr.mxu0 0.0
    %139 = vmatpush1.msra.mxu0 0.0
    %140 = vmatprep.subr.mxu0 0.0
    %141 = vmatpush1.msra.mxu0 0.0
    %142 = vmatprep.subr.mxu0 0.0
    %143 = vmatpush1.msra.mxu0 0.0
    %144 = vmatprep.subr.mxu0 0.0
    %145 = vmatpush1.msra.mxu0 0.0
    %146 = vmatprep.subr.mxu0 0.0
    %147 = vmatpush1.msra.mxu0 0.0
    %148 = vmatprep.subr.mxu0 0.0
    %149 = vmatpush1.msra.mxu0 0.0
    %150 = vmatprep.subr.mxu0 0.0
    %151 = vmatpush1.msra.mxu0 0.0
    %152 = vmatprep.subr.mxu0 0.0
    %153 = vmatpush1.msra.mxu0 0.0
    %154 = vmatprep.subr.mxu0 0.0
    %155 = vmatpush1.msra.mxu0 0.0
    %156 = vmatprep.subr.mxu0 0.0
    %157 = vmatpush1.msra.mxu0 0.0
    %158 = vmatprep.subr.mxu0 0.0
    %159 = vmatpush1.msra.mxu0 0.0
    %160 = vmatprep.subr.mxu0 0.0
    %161 = vmatpush1.msra.mxu0 0.0
    %162 = vmatprep.subr.mxu0 0.0
    %163 = vmatpush1.msra.mxu0 0.0
    %164 = vmatprep.subr.mxu0 0.0
    %165 = vmatpush1.msra.mxu0 0.0
    %166 = vmatprep.subr.mxu0 0.0
    %167 = vmatpush1.msra.mxu0 0.0
    %168 = vmatprep.subr.mxu0 0.0
    %169 = vmatpush1.msra.mxu0 0.0
    %170 = vmatprep.subr.mxu0 0.0
    %171 = vmatpush1.msra.mxu0 0.0
    %172 = vmatprep.subr.mxu0 0.0
    %173 = vmatpush1.msra.mxu0 0.0
    %174 = vmatprep.subr.mxu0 0.0
    %175 = vmatpush1.msra.mxu0 0.0
    %176 = vmatprep.subr.mxu0 0.0
    %177 = vmatpush1.msra.mxu0 0.0
    %178 = vmatprep.subr.mxu0 0.0
    %179 = vmatpush1.msra.mxu0 0.0
    %180 = vmatprep.subr.mxu0 0.0
    %181 = vmatpush1.msra.mxu0 0.0
    %182 = vmatprep.subr.mxu0 0.0
    %183 = vmatpush1.msra.mxu0 0.0
    %184 = vmatprep.subr.mxu0 0.0
    %185 = vmatpush1.msra.mxu0 0.0
    %186 = vmatprep.subr.mxu0 0.0
    %187 = vmatpush1.msra.mxu0 0.0
    %188 = vmatprep.subr.mxu0 0.0
    %189 = vmatpush1.msra.mxu0 0.0
    %190 = vmatprep.subr.mxu0 0.0
    %191 = vmatpush1.msra.mxu0 0.0
    %192 = vmatprep.subr.mxu0 0.0
    %193 = vmatpush1.msra.mxu0 0.0
    %194 = vmatprep.subr.mxu0 0.0
    %195 = vmatpush1.msra.mxu0 0.0
    %196 = vmatprep.subr.mxu0 0.0
    %197 = vmatpush1.msra.mxu0 0.0
    %198 = vmatprep.mubr.f32.mxu0 0.0
    %199 = vmatmul.mubr.f32.gmra.mrb[0].mxu0 %v132
    %v200 = vpop.f32.mrb[0].mxu0
    %v201 = vadd.f32 %v113, %v200
    %v202 = vpop.f32.mrb[0].mxu0
    %v203 = vadd.f32 %v117, %v202
    %204 = vdwg.mxu0
    %205 = vmatprep.subr.mxu0 %v103
    %206 = vmatpush1.msra.mxu0 %v102
    %207 = vmatprep.subr.mxu0 %v107
    %208 = vmatpush1.msra.mxu0 %v106
    %209 = vmatprep.subr.mxu0 0.0
    %210 = vmatpush1.msra.mxu0 0.0
    %211 = vmatprep.subr.mxu0 0.0
    %212 = vmatpush1.msra.mxu0 0.0
    %213 = vmatprep.subr.mxu0 0.0
    %214 = vmatpush1.msra.mxu0 0.0
    %215 = vmatprep.subr.mxu0 0.0
    %216 = vmatpush1.msra.mxu0 0.0
    %217 = vmatprep.subr.mxu0 0.0
    %218 = vmatpush1.msra.mxu0 0.0
    %219 = vmatprep.subr.mxu0 0.0
    %220 = vmatpush1.msra.mxu0 0.0
    %221 = vmatprep.subr.mxu0 0.0
    %222 = vmatpush1.msra.mxu0 0.0
    %223 = vmatprep.subr.mxu0 0.0
    %224 = vmatpush1.msra.mxu0 0.0
    %225 = vmatprep.subr.mxu0 0.0
    %226 = vmatpush1.msra.mxu0 0.0
    %227 = vmatprep.subr.mxu0 0.0
    %228 = vmatpush1.msra.mxu0 0.0
    %229 = vmatprep.subr.mxu0 0.0
    %230 = vmatpush1.msra.mxu0 0.0
    %231 = vmatprep.subr.mxu0 0.0
    %232 = vmatpush1.msra.mxu0 0.0
    %233 = vmatprep.subr.mxu0 0.0
    %234 = vmatpush1.msra.mxu0 0.0
    %235 = vmatprep.subr.mxu0 0.0
    %236 = vmatpush1.msra.mxu0 0.0
    %237 = vmatprep.subr.mxu0 0.0
    %238 = vmatpush1.msra.mxu0 0.0
    %239 = vmatprep.subr.mxu0 0.0
    %240 = vmatpush1.msra.mxu0 0.0
    %241 = vmatprep.subr.mxu0 0.0
    %242 = vmatpush1.msra.mxu0 0.0
    %243 = vmatprep.subr.mxu0 0.0
    %244 = vmatpush1.msra.mxu0 0.0
    %245 = vmatprep.subr.mxu0 0.0
    %246 = vmatpush1.msra.mxu0 0.0
    %247 = vmatprep.subr.mxu0 0.0
    %248 = vmatpush1.msra.mxu0 0.0
    %249 = vmatprep.subr.mxu0 0.0
    %250 = vmatpush1.msra.mxu0 0.0
    %251 = vmatprep.subr.mxu0 0.0
    %252 = vmatpush1.msra.mxu0 0.0
    %253 = vmatprep.subr.mxu0 0.0
    %254 = vmatpush1.msra.mxu0 0.0
    %255 = vmatprep.subr.mxu0 0.0
    %256 = vmatpush1.msra.mxu0 0.0
    %257 = vmatprep.subr.mxu0 0.0
    %258 = vmatpush1.msra.mxu0 0.0
    %259 = vmatprep.subr.mxu0 0.0
    %260 = vmatpush1.msra.mxu0 0.0
    %261 = vmatprep.subr.mxu0 0.0
    %262 = vmatpush1.msra.mxu0 0.0
    %263 = vmatprep.subr.mxu0 0.0
    %264 = vmatpush1.msra.mxu0 0.0
    %265 = vmatprep.subr.mxu0 0.0
    %266 = vmatpush1.msra.mxu0 0.0
    %267 = vmatprep.subr.mxu0 0.0
    %268 = vmatpush1.msra.mxu0 0.0
    %269 = vmatprep.mubr.f32.mxu0 0.0
    %270 = vmatmul.mubr.f32.gmra.mrb[0].mxu0 %v132
    %v271 = vpop.f32.mrb[0].mxu0
    %v272 = vadd.f32 %v121, %v271
    %v273 = vpop.f32.mrb[0].mxu0
    %v274 = vadd.f32 %v125, %v273
    %275 = vdwg.mxu0
    %v276 = vtanh.pop %v201
    %v277 = vtanh.pop %v203
    %v278 = vtanh.pop %v272
    %v279 = vtanh.pop %v274
    %v280 = vld [vmem:[#allocation7] sm:$0xff]
    %v281 = vld [vmem:[#allocation7 + $0x8] sm:$0xff]
    %v282 = vld [vmem:[#allocation7 + $0x10] sm:$0xff]
    %v283 = vld [vmem:[#allocation7 + $0x18] sm:$0xff]
    %v284 = vld [vmem:[#allocation7 + $0x20] sm:$0xff]
    %v285 = vld [vmem:[#allocation7 + $0x28] sm:$0xff]
    %v286 = vld [vmem:[#allocation7 + $0x30] sm:$0xff]
    %v287 = vld [vmem:[#allocation7 + $0x38] sm:$0xff]
    %v288 = vld [vmem:[#allocation7 + $0x40] sm:$0xff]
    %v289 = vld [vmem:[#allocation7 + $0x48] sm:$0xff]
    %v290 = vld [vmem:[#allocation7 + $0x50] sm:$0xff]
    %v291 = vld [vmem:[#allocation7 + $0x58] sm:$0xff]
    %v292 = vld [vmem:[#allocation7 + $0x60] sm:$0xff]
    %v293 = vld [vmem:[#allocation7 + $0x68] sm:$0xff]
    %v294 = vld [vmem:[#allocation7 + $0x70] sm:$0xff]
    %v295 = vld [vmem:[#allocation7 + $0x78] sm:$0xff]
    %v296 = vld [vmem:[#allocation7 + $0x80] sm:$0xff]
    %v297 = vld [vmem:[#allocation7 + $0x88] sm:$0xff]
    %v298 = vld [vmem:[#allocation7 + $0x90] sm:$0xff]
    %v299 = vld [vmem:[#allocation7 + $0x98] sm:$0xff]
    %v300 = vld [vmem:[#allocation7 + $0xa0] sm:$0xff]
    %v301 = vld [vmem:[#allocation7 + $0xa8] sm:$0xff]
    %v302 = vld [vmem:[#allocation7 + $0xb0] sm:$0xff]
    %v303 = vld [vmem:[#allocation7 + $0xb8] sm:$0xff]
    %v304 = vld [vmem:[#allocation7 + $0xc0] sm:$0xff]
    %v305 = vld [vmem:[#allocation7 + $0xc8] sm:$0xff]
    %v306 = vld [vmem:[#allocation7 + $0xd0] sm:$0xff]
    %v307 = vld [vmem:[#allocation7 + $0xd8] sm:$0xff]
    %v308 = vld [vmem:[#allocation7 + $0xe0] sm:$0xff]
    %v309 = vld [vmem:[#allocation7 + $0xe8] sm:$0xff]
    %v310 = vld [vmem:[#allocation7 + $0xf0] sm:$0xff]
    %v311 = vld [vmem:[#allocation7 + $0xf8] sm:$0xff]
    %v312 = vld [vmem:[#allocation7 + $0x100] sm:$0xff]
    %v313 = vld [vmem:[#allocation7 + $0x108] sm:$0xff]
    %v314 = vld [vmem:[#allocation7 + $0x110] sm:$0xff]
    %v315 = vld [vmem:[#allocation7 + $0x118] sm:$0xff]
    %v316 = vld [vmem:[#allocation7 + $0x120] sm:$0xff]
    %v317 = vld [vmem:[#allocation7 + $0x128] sm:$0xff]
    %v318 = vld [vmem:[#allocation7 + $0x130] sm:$0xff]
    %v319 = vld [vmem:[#allocation7 + $0x138] sm:$0xff]
    %v320 = vld [vmem:[#allocation7 + $0x140] sm:$0xff]
    %v321 = vld [vmem:[#allocation7 + $0x148] sm:$0xff]
    %v322 = vld [vmem:[#allocation7 + $0x150] sm:$0xff]
    %v323 = vld [vmem:[#allocation7 + $0x158] sm:$0xff]
    %v324 = vld [vmem:[#allocation7 + $0x160] sm:$0xff]
    %v325 = vld [vmem:[#allocation7 + $0x168] sm:$0xff]
    %v326 = vld [vmem:[#allocation7 + $0x170] sm:$0xff]
    %v327 = vld [vmem:[#allocation7 + $0x178] sm:$0xff]
    %v328 = vld [vmem:[#allocation7 + $0x180] sm:$0xff]
    %v329 = vld [vmem:[#allocation7 + $0x188] sm:$0xff]
    %v330 = vld [vmem:[#allocation7 + $0x190] sm:$0xff]
    %v331 = vld [vmem:[#allocation7 + $0x198] sm:$0xff]
    %v332 = vld [vmem:[#allocation7 + $0x1a0] sm:$0xff]
    %v333 = vld [vmem:[#allocation7 + $0x1a8] sm:$0xff]
    %v334 = vld [vmem:[#allocation7 + $0x1b0] sm:$0xff]
    %v335 = vld [vmem:[#allocation7 + $0x1b8] sm:$0xff]
    %v336 = vld [vmem:[#allocation7 + $0x1c0] sm:$0xff]
    %v337 = vld [vmem:[#allocation7 + $0x1c8] sm:$0xff]
    %v338 = vld [vmem:[#allocation7 + $0x1d0] sm:$0xff]
    %v339 = vld [vmem:[#allocation7 + $0x1d8] sm:$0xff]
    %v340 = vld [vmem:[#allocation7 + $0x1e0] sm:$0xff]
    %v341 = vld [vmem:[#allocation7 + $0x1e8] sm:$0xff]
    %v342 = vld [vmem:[#allocation7 + $0x1f0] sm:$0xff]
    %v343 = vld [vmem:[#allocation7 + $0x1f8] sm:$0xff]
    %v344 = vld [vmem:[#allocation7 + $0x200] sm:$0xff]
    %v345 = vld [vmem:[#allocation7 + $0x208] sm:$0xff]
    %v346 = vld [vmem:[#allocation7 + $0x210] sm:$0xff]
    %v347 = vld [vmem:[#allocation7 + $0x218] sm:$0xff]
    %v348 = vld [vmem:[#allocation7 + $0x220] sm:$0xff]
    %v349 = vld [vmem:[#allocation7 + $0x228] sm:$0xff]
    %v350 = vld [vmem:[#allocation7 + $0x230] sm:$0xff]
    %v351 = vld [vmem:[#allocation7 + $0x238] sm:$0xff]
    %v352 = vld [vmem:[#allocation7 + $0x240] sm:$0xff]
    %v353 = vld [vmem:[#allocation7 + $0x248] sm:$0xff]
    %v354 = vld [vmem:[#allocation7 + $0x250] sm:$0xff]
    %v355 = vld [vmem:[#allocation7 + $0x258] sm:$0xff]
    %v356 = vld [vmem:[#allocation7 + $0x260] sm:$0xff]
    %v357 = vld [vmem:[#allocation7 + $0x268] sm:$0xff]
    %v358 = vld [vmem:[#allocation7 + $0x270] sm:$0xff]
    %v359 = vld [vmem:[#allocation7 + $0x278] sm:$0xff]
    %v360 = vld [vmem:[#allocation7 + $0x280] sm:$0xff]
    %v361 = vld [vmem:[#allocation7 + $0x288] sm:$0xff]
    %v362 = vld [vmem:[#allocation7 + $0x290] sm:$0xff]
    %v363 = vld [vmem:[#allocation7 + $0x298] sm:$0xff]
    %v364 = vld [vmem:[#allocation7 + $0x2a0] sm:$0xff]
    %v365 = vld [vmem:[#allocation7 + $0x2a8] sm:$0xff]
    %v366 = vld [vmem:[#allocation7 + $0x2b0] sm:$0xff]
    %v367 = vld [vmem:[#allocation7 + $0x2b8] sm:$0xff]
    %v368 = vld [vmem:[#allocation7 + $0x2c0] sm:$0xff]
    %v369 = vld [vmem:[#allocation7 + $0x2c8] sm:$0xff]
    %v370 = vld [vmem:[#allocation7 + $0x2d0] sm:$0xff]
    %v371 = vld [vmem:[#allocation7 + $0x2d8] sm:$0xff]
    %v372 = vld [vmem:[#allocation7 + $0x2e0] sm:$0xff]
    %v373 = vld [vmem:[#allocation7 + $0x2e8] sm:$0xff]
    %v374 = vld [vmem:[#allocation7 + $0x2f0] sm:$0xff]
    %v375 = vld [vmem:[#allocation7 + $0x2f8] sm:$0xff]
    %v376 = vld [vmem:[#allocation7 + $0x300] sm:$0xff]
    %v377 = vld [vmem:[#allocation7 + $0x308] sm:$0xff]
    %v378 = vld [vmem:[#allocation7 + $0x310] sm:$0xff]
    %v379 = vld [vmem:[#allocation7 + $0x318] sm:$0xff]
    %v380 = vld [vmem:[#allocation7 + $0x320] sm:$0xff]
    %v381 = vld [vmem:[#allocation7 + $0x328] sm:$0xff]
    %v382 = vld [vmem:[#allocation7 + $0x330] sm:$0xff]
    %v383 = vld [vmem:[#allocation7 + $0x338] sm:$0xff]
    %v384 = vld [vmem:[#allocation7 + $0x340] sm:$0xff]
    %v385 = vld [vmem:[#allocation7 + $0x348] sm:$0xff]
    %v386 = vld [vmem:[#allocation7 + $0x350] sm:$0xff]
    %v387 = vld [vmem:[#allocation7 + $0x358] sm:$0xff]
    %v388 = vld [vmem:[#allocation7 + $0x360] sm:$0xff]
    %v389 = vld [vmem:[#allocation7 + $0x368] sm:$0xff]
    %v390 = vld [vmem:[#allocation7 + $0x370] sm:$0xff]
    %v391 = vld [vmem:[#allocation7 + $0x378] sm:$0xff]
    %v392 = vld [vmem:[#allocation7 + $0x380] sm:$0xff]
    %v393 = vld [vmem:[#allocation7 + $0x388] sm:$0xff]
    %v394 = vld [vmem:[#allocation7 + $0x390] sm:$0xff]
    %v395 = vld [vmem:[#allocation7 + $0x398] sm:$0xff]
    %v396 = vld [vmem:[#allocation7 + $0x3a0] sm:$0xff]
    %v397 = vld [vmem:[#allocation7 + $0x3a8] sm:$0xff]
    %v398 = vld [vmem:[#allocation7 + $0x3b0] sm:$0xff]
    %v399 = vld [vmem:[#allocation7 + $0x3b8] sm:$0xff]
    %v400 = vld [vmem:[#allocation7 + $0x3c0] sm:$0xff]
    %v401 = vld [vmem:[#allocation7 + $0x3c8] sm:$0xff]
    %v402 = vld [vmem:[#allocation7 + $0x3d0] sm:$0xff]
    %v403 = vld [vmem:[#allocation7 + $0x3d8] sm:$0xff]
    %v404 = vld [vmem:[#allocation7 + $0x3e0] sm:$0xff]
    %v405 = vld [vmem:[#allocation7 + $0x3e8] sm:$0xff]
    %v406 = vld [vmem:[#allocation7 + $0x3f0] sm:$0xff]
    %v407 = vld [vmem:[#allocation7 + $0x3f8] sm:$0xff]
    %v408 = vld [vmem:[%s4] sm:$0x3]
    %v410 = vlaneseq
    %v411 = vshrl.u32 %v410, 7
    %v412 = vsub.s32 0, %v411
    %v413 = vrot.slane %v408, %v412
    %v414 = vlaneseq
    %v415 = vshrl.u32 %v414, 7
    %v416 = vsub.s32 1, %v415
    %v417 = vrot.slane %v408, %v416
    %420 = vmatprep.subr.mxu0 %v281
    %421 = vmatpush1.msra.mxu0 %v280
    %422 = vmatprep.subr.mxu0 %v283
    %423 = vmatpush1.msra.mxu0 %v282
    %424 = vmatprep.subr.mxu0 %v285
    %425 = vmatpush1.msra.mxu0 %v284
    %426 = vmatprep.subr.mxu0 %v287
    %427 = vmatpush1.msra.mxu0 %v286
    %428 = vmatprep.subr.mxu0 %v289
    %429 = vmatpush1.msra.mxu0 %v288
    %430 = vmatprep.subr.mxu0 %v291
    %431 = vmatpush1.msra.mxu0 %v290
    %432 = vmatprep.subr.mxu0 %v293
    %433 = vmatpush1.msra.mxu0 %v292
    %434 = vmatprep.subr.mxu0 %v295
    %435 = vmatpush1.msra.mxu0 %v294
    %436 = vmatprep.subr.mxu0 %v297
    %437 = vmatpush1.msra.mxu0 %v296
    %438 = vmatprep.subr.mxu0 %v299
    %439 = vmatpush1.msra.mxu0 %v298
    %440 = vmatprep.subr.mxu0 %v301
    %441 = vmatpush1.msra.mxu0 %v300
    %442 = vmatprep.subr.mxu0 %v303
    %443 = vmatpush1.msra.mxu0 %v302
    %444 = vmatprep.subr.mxu0 %v305
    %445 = vmatpush1.msra.mxu0 %v304
    %446 = vmatprep.subr.mxu0 %v307
    %447 = vmatpush1.msra.mxu0 %v306
    %448 = vmatprep.subr.mxu0 %v309
    %449 = vmatpush1.msra.mxu0 %v308
    %450 = vmatprep.subr.mxu0 %v311
    %451 = vmatpush1.msra.mxu0 %v310
    %452 = vmatprep.subr.mxu0 %v313
    %453 = vmatpush1.msra.mxu0 %v312
    %454 = vmatprep.subr.mxu0 %v315
    %455 = vmatpush1.msra.mxu0 %v314
    %456 = vmatprep.subr.mxu0 %v317
    %457 = vmatpush1.msra.mxu0 %v316
    %458 = vmatprep.subr.mxu0 %v319
    %459 = vmatpush1.msra.mxu0 %v318
    %460 = vmatprep.subr.mxu0 %v321
    %461 = vmatpush1.msra.mxu0 %v320
    %462 = vmatprep.subr.mxu0 %v323
    %463 = vmatpush1.msra.mxu0 %v322
    %464 = vmatprep.subr.mxu0 %v325
    %465 = vmatpush1.msra.mxu0 %v324
    %466 = vmatprep.subr.mxu0 %v327
    %467 = vmatpush1.msra.mxu0 %v326
    %468 = vmatprep.subr.mxu0 %v329
    %469 = vmatpush1.msra.mxu0 %v328
    %470 = vmatprep.subr.mxu0 %v331
    %471 = vmatpush1.msra.mxu0 %v330
    %472 = vmatprep.subr.mxu0 %v333
    %473 = vmatpush1.msra.mxu0 %v332
    %474 = vmatprep.subr.mxu0 %v335
    %475 = vmatpush1.msra.mxu0 %v334
    %476 = vmatprep.subr.mxu0 %v337
    %477 = vmatpush1.msra.mxu0 %v336
    %478 = vmatprep.subr.mxu0 %v339
    %479 = vmatpush1.msra.mxu0 %v338
    %480 = vmatprep.subr.mxu0 %v341
    %481 = vmatpush1.msra.mxu0 %v340
    %482 = vmatprep.subr.mxu0 %v343
    %483 = vmatpush1.msra.mxu0 %v342
    %484 = vmatprep.mubr.f32.mxu0 %v277
    %485 = vmatmul.mubr.f32.gmra.mrb[0].mxu0 %v276
    %v486 = vpop.f32.mrb[0].mxu0
    %v487 = vadd.f32 %v413, %v486
    %v488 = vpop.f32.mrb[0].mxu0
    %v489 = vadd.f32 %v417, %v488
    %490 = vdwg.mxu0
    %491 = vmatprep.subr.mxu0 %v345
    %492 = vmatpush1.msra.mxu0 %v344
    %493 = vmatprep.subr.mxu0 %v347
    %494 = vmatpush1.msra.mxu0 %v346
    %495 = vmatprep.subr.mxu0 %v349
    %496 = vmatpush1.msra.mxu0 %v348
    %497 = vmatprep.subr.mxu0 %v351
    %498 = vmatpush1.msra.mxu0 %v350
    %499 = vmatprep.subr.mxu0 %v353
    %500 = vmatpush1.msra.mxu0 %v352
    %501 = vmatprep.subr.mxu0 %v355
    %502 = vmatpush1.msra.mxu0 %v354
    %503 = vmatprep.subr.mxu0 %v357
    %504 = vmatpush1.msra.mxu0 %v356
    %505 = vmatprep.subr.mxu0 %v359
    %506 = vmatpush1.msra.mxu0 %v358
    %507 = vmatprep.subr.mxu0 %v361
    %508 = vmatpush1.msra.mxu0 %v360
    %509 = vmatprep.subr.mxu0 %v363
    %510 = vmatpush1.msra.mxu0 %v362
    %511 = vmatprep.subr.mxu0 %v365
    %512 = vmatpush1.msra.mxu0 %v364
    %513 = vmatprep.subr.mxu0 %v367
    %514 = vmatpush1.msra.mxu0 %v366
    %515 = vmatprep.subr.mxu0 %v369
    %516 = vmatpush1.msra.mxu0 %v368
    %517 = vmatprep.subr.mxu0 %v371
    %518 = vmatpush1.msra.mxu0 %v370
    %519 = vmatprep.subr.mxu0 %v373
    %520 = vmatpush1.msra.mxu0 %v372
    %521 = vmatprep.subr.mxu0 %v375
    %522 = vmatpush1.msra.mxu0 %v374
    %523 = vmatprep.subr.mxu0 %v377
    %524 = vmatpush1.msra.mxu0 %v376
    %525 = vmatprep.subr.mxu0 %v379
    %526 = vmatpush1.msra.mxu0 %v378
    %527 = vmatprep.subr.mxu0 %v381
    %528 = vmatpush1.msra.mxu0 %v380
    %529 = vmatprep.subr.mxu0 %v383
    %530 = vmatpush1.msra.mxu0 %v382
    %531 = vmatprep.subr.mxu0 %v385
    %532 = vmatpush1.msra.mxu0 %v384
    %533 = vmatprep.subr.mxu0 %v387
    %534 = vmatpush1.msra.mxu0 %v386
    %535 = vmatprep.subr.mxu0 %v389
    %536 = vmatpush1.msra.mxu0 %v388
    %537 = vmatprep.subr.mxu0 %v391
    %538 = vmatpush1.msra.mxu0 %v390
    %539 = vmatprep.subr.mxu0 %v393
    %540 = vmatpush1.msra.mxu0 %v392
    %541 = vmatprep.subr.mxu0 %v395
    %542 = vmatpush1.msra.mxu0 %v394
    %543 = vmatprep.subr.mxu0 %v397
    %544 = vmatpush1.msra.mxu0 %v396
    %545 = vmatprep.subr.mxu0 %v399
    %546 = vmatpush1.msra.mxu0 %v398
    %547 = vmatprep.subr.mxu0 %v401
    %548 = vmatpush1.msra.mxu0 %v400
    %549 = vmatprep.subr.mxu0 %v403
    %550 = vmatpush1.msra.mxu0 %v402
    %551 = vmatprep.subr.mxu0 %v405
    %552 = vmatpush1.msra.mxu0 %v404
    %553 = vmatprep.subr.mxu0 %v407
    %554 = vmatpush1.msra.mxu0 %v406
    %555 = vmatprep.mubr.f32.mxu0 %v279
    %556 = vmatmul.mubr.f32.gmra.mrb[0].mxu0 %v278
    %v557 = vpop.f32.mrb[0].mxu0
    %v558 = vadd.f32 %v487, %v557
    %v559 = vpop.f32.mrb[0].mxu0
    %v560 = vadd.f32 %v489, %v559
    %561 = vdwg.mxu0
    %v562 = vtanh.pop %v558
    %v563 = vtanh.pop %v560
    %v564 = vld [vmem:[#allocation8] sm:$0xff]
    %v565 = vld [vmem:[#allocation8 + $0x8] sm:$0xff]
    %v566 = vld [vmem:[#allocation8 + $0x10] sm:$0xff]
    %v567 = vld [vmem:[#allocation8 + $0x18] sm:$0xff]
    %v568 = vld [vmem:[#allocation8 + $0x20] sm:$0xff]
    %v569 = vld [vmem:[#allocation8 + $0x28] sm:$0xff]
    %v570 = vld [vmem:[#allocation8 + $0x30] sm:$0xff]
    %v571 = vld [vmem:[#allocation8 + $0x38] sm:$0xff]
    %v572 = vld [vmem:[#allocation8 + $0x40] sm:$0xff]
    %v573 = vld [vmem:[#allocation8 + $0x48] sm:$0xff]
    %v574 = vld [vmem:[#allocation8 + $0x50] sm:$0xff]
    %v575 = vld [vmem:[#allocation8 + $0x58] sm:$0xff]
    %v576 = vld [vmem:[#allocation8 + $0x60] sm:$0xff]
    %v577 = vld [vmem:[#allocation8 + $0x68] sm:$0xff]
    %v578 = vld [vmem:[#allocation8 + $0x70] sm:$0xff]
    %v579 = vld [vmem:[#allocation8 + $0x78] sm:$0xff]
    %v580 = vld [vmem:[#allocation8 + $0x80] sm:$0xff]
    %v581 = vld [vmem:[#allocation8 + $0x88] sm:$0xff]
    %v582 = vld [vmem:[#allocation8 + $0x90] sm:$0xff]
    %v583 = vld [vmem:[#allocation8 + $0x98] sm:$0xff]
    %v584 = vld [vmem:[#allocation8 + $0xa0] sm:$0xff]
    %v585 = vld [vmem:[#allocation8 + $0xa8] sm:$0xff]
    %v586 = vld [vmem:[#allocation8 + $0xb0] sm:$0xff]
    %v587 = vld [vmem:[#allocation8 + $0xb8] sm:$0xff]
    %v588 = vld [vmem:[#allocation8 + $0xc0] sm:$0xff]
    %v589 = vld [vmem:[#allocation8 + $0xc8] sm:$0xff]
    %v590 = vld [vmem:[#allocation8 + $0xd0] sm:$0xff]
    %v591 = vld [vmem:[#allocation8 + $0xd8] sm:$0xff]
    %v592 = vld [vmem:[#allocation8 + $0xe0] sm:$0xff]
    %v593 = vld [vmem:[#allocation8 + $0xe8] sm:$0xff]
    %v594 = vld [vmem:[#allocation8 + $0xf0] sm:$0xff]
    %v595 = vld [vmem:[#allocation8 + $0xf8] sm:$0xff]
    %v596 = vld [vmem:[%s6] sm:$0x1]
    %v598 = vlaneseq
    %v599 = vshrl.u32 %v598, 7
    %v600 = vsub.s32 0, %v599
    %v601 = vrot.slane %v596, %v600
    %603 = vmatprep.subr.mxu0 0.0
    %604 = vmatpush1.msra.mxu0 %v564
    %605 = vmatprep.subr.mxu0 0.0
    %606 = vmatpush1.msra.mxu0 %v565
    %607 = vmatprep.subr.mxu0 0.0
    %608 = vmatpush1.msra.mxu0 %v566
    %609 = vmatprep.subr.mxu0 0.0
    %610 = vmatpush1.msra.mxu0 %v567
    %611 = vmatprep.subr.mxu0 0.0
    %612 = vmatpush1.msra.mxu0 %v568
    %613 = vmatprep.subr.mxu0 0.0
    %614 = vmatpush1.msra.mxu0 %v569
    %615 = vmatprep.subr.mxu0 0.0
    %616 = vmatpush1.msra.mxu0 %v570
    %617 = vmatprep.subr.mxu0 0.0
    %618 = vmatpush1.msra.mxu0 %v571
    %619 = vmatprep.subr.mxu0 0.0
    %620 = vmatpush1.msra.mxu0 %v572
    %621 = vmatprep.subr.mxu0 0.0
    %622 = vmatpush1.msra.mxu0 %v573
    %623 = vmatprep.subr.mxu0 0.0
    %624 = vmatpush1.msra.mxu0 %v574
    %625 = vmatprep.subr.mxu0 0.0
    %626 = vmatpush1.msra.mxu0 %v575
    %627 = vmatprep.subr.mxu0 0.0
    %628 = vmatpush1.msra.mxu0 %v576
    %629 = vmatprep.subr.mxu0 0.0
    %630 = vmatpush1.msra.mxu0 %v577
    %631 = vmatprep.subr.mxu0 0.0
    %632 = vmatpush1.msra.mxu0 %v578
    %633 = vmatprep.subr.mxu0 0.0
    %634 = vmatpush1.msra.mxu0 %v579
    %635 = vmatprep.subr.mxu0 0.0
    %636 = vmatpush1.msra.mxu0 %v580
    %637 = vmatprep.subr.mxu0 0.0
    %638 = vmatpush1.msra.mxu0 %v581
    %639 = vmatprep.subr.mxu0 0.0
    %640 = vmatpush1.msra.mxu0 %v582
    %641 = vmatprep.subr.mxu0 0.0
    %642 = vmatpush1.msra.mxu0 %v583
    %643 = vmatprep.subr.mxu0 0.0
    %644 = vmatpush1.msra.mxu0 %v584
    %645 = vmatprep.subr.mxu0 0.0
    %646 = vmatpush1.msra.mxu0 %v585
    %647 = vmatprep.subr.mxu0 0.0
    %648 = vmatpush1.msra.mxu0 %v586
    %649 = vmatprep.subr.mxu0 0.0
    %650 = vmatpush1.msra.mxu0 %v587
    %651 = vmatprep.subr.mxu0 0.0
    %652 = vmatpush1.msra.mxu0 %v588
    %653 = vmatprep.subr.mxu0 0.0
    %654 = vmatpush1.msra.mxu0 %v589
    %655 = vmatprep.subr.mxu0 0.0
    %656 = vmatpush1.msra.mxu0 %v590
    %657 = vmatprep.subr.mxu0 0.0
    %658 = vmatpush1.msra.mxu0 %v591
    %659 = vmatprep.subr.mxu0 0.0
    %660 = vmatpush1.msra.mxu0 %v592
    %661 = vmatprep.subr.mxu0 0.0
    %662 = vmatpush1.msra.mxu0 %v593
    %663 = vmatprep.subr.mxu0 0.0
    %664 = vmatpush1.msra.mxu0 %v594
    %665 = vmatprep.subr.mxu0 0.0
    %666 = vmatpush1.msra.mxu0 %v595
    %667 = vmatprep.mubr.f32.mxu0 %v563
    %668 = vmatmul.mubr.f32.gmra.mrb[0].mxu0 %v562
    %v669 = vpop.f32.mrb[0].mxu0
    %v670 = vadd.f32 %v601, %v669
    %v671 = vpop.f32.mrb[0].mxu0
    %672 = vdwg.mxu0
    %v673 = vtanh.pop %v670
    %v674 = vld [vmem:[#allocation10] sm:$0xff]
    %v675 = vld [vmem:[#allocation10 + $0x8] sm:$0xff]
    %v676 = vld [vmem:[#allocation10 + $0x10] sm:$0xff]
    %v677 = vld [vmem:[#allocation10 + $0x18] sm:$0xff]
    %v678 = vld [vmem:[#allocation10 + $0x20] sm:$0xff]
    %v679 = vld [vmem:[#allocation10 + $0x28] sm:$0xff]
    %v680 = vld [vmem:[#allocation10 + $0x30] sm:$0xff]
    %v681 = vld [vmem:[#allocation10 + $0x38] sm:$0xff]
    %v682 = vld [vmem:[#allocation10 + $0x40] sm:$0xff]
    %v683 = vld [vmem:[#allocation10 + $0x48] sm:$0xff]
    %v684 = vld [vmem:[#allocation10 + $0x50] sm:$0xff]
    %v685 = vld [vmem:[#allocation10 + $0x58] sm:$0xff]
    %v686 = vld [vmem:[#allocation10 + $0x60] sm:$0xff]
    %v687 = vld [vmem:[#allocation10 + $0x68] sm:$0xff]
    %v688 = vld [vmem:[#allocation10 + $0x70] sm:$0xff]
    %v689 = vld [vmem:[#allocation10 + $0x78] sm:$0xff]
    %v690 = vld [vmem:[%s8] sm:$0x1]
    %v692 = vlaneseq
    %v693 = vshrl.u32 %v692, 7
    %v694 = vsub.s32 0, %v693
    %v695 = vrot.slane %v690, %v694
    %697 = vmatprep.subr.mxu0 0.0
    %698 = vmatpush1.msra.mxu0 %v674
    %699 = vmatprep.subr.mxu0 0.0
    %700 = vmatpush1.msra.mxu0 %v675
    %701 = vmatprep.subr.mxu0 0.0
    %702 = vmatpush1.msra.mxu0 %v676
    %703 = vmatprep.subr.mxu0 0.0
    %704 = vmatpush1.msra.mxu0 %v677
    %705 = vmatprep.subr.mxu0 0.0
    %706 = vmatpush1.msra.mxu0 %v678
    %707 = vmatprep.subr.mxu0 0.0
    %708 = vmatpush1.msra.mxu0 %v679
    %709 = vmatprep.subr.mxu0 0.0
    %710 = vmatpush1.msra.mxu0 %v680
    %711 = vmatprep.subr.mxu0 0.0
    %712 = vmatpush1.msra.mxu0 %v681
    %713 = vmatprep.subr.mxu0 0.0
    %714 = vmatpush1.msra.mxu0 %v682
    %715 = vmatprep.subr.mxu0 0.0
    %716 = vmatpush1.msra.mxu0 %v683
    %717 = vmatprep.subr.mxu0 0.0
    %718 = vmatpush1.msra.mxu0 %v684
    %719 = vmatprep.subr.mxu0 0.0
    %720 = vmatpush1.msra.mxu0 %v685
    %721 = vmatprep.subr.mxu0 0.0
    %722 = vmatpush1.msra.mxu0 %v686
    %723 = vmatprep.subr.mxu0 0.0
    %724 = vmatpush1.msra.mxu0 %v687
    %725 = vmatprep.subr.mxu0 0.0
    %726 = vmatpush1.msra.mxu0 %v688
    %727 = vmatprep.subr.mxu0 0.0
    %728 = vmatpush1.msra.mxu0 %v689
    %729 = vmatprep.subr.mxu0 0.0
    %730 = vmatpush1.msra.mxu0 0.0
    %731 = vmatprep.subr.mxu0 0.0
    %732 = vmatpush1.msra.mxu0 0.0
    %733 = vmatprep.subr.mxu0 0.0
    %734 = vmatpush1.msra.mxu0 0.0
    %735 = vmatprep.subr.mxu0 0.0
    %736 = vmatpush1.msra.mxu0 0.0
    %737 = vmatprep.subr.mxu0 0.0
    %738 = vmatpush1.msra.mxu0 0.0
    %739 = vmatprep.subr.mxu0 0.0
    %740 = vmatpush1.msra.mxu0 0.0
    %741 = vmatprep.subr.mxu0 0.0
    %742 = vmatpush1.msra.mxu0 0.0
    %743 = vmatprep.subr.mxu0 0.0
    %744 = vmatpush1.msra.mxu0 0.0
    %745 = vmatprep.subr.mxu0 0.0
    %746 = vmatpush1.msra.mxu0 0.0
    %747 = vmatprep.subr.mxu0 0.0
    %748 = vmatpush1.msra.mxu0 0.0
    %749 = vmatprep.subr.mxu0 0.0
    %750 = vmatpush1.msra.mxu0 0.0
    %751 = vmatprep.subr.mxu0 0.0
    %752 = vmatpush1.msra.mxu0 0.0
    %753 = vmatprep.subr.mxu0 0.0
    %754 = vmatpush1.msra.mxu0 0.0
    %755 = vmatprep.subr.mxu0 0.0
    %756 = vmatpush1.msra.mxu0 0.0
    %757 = vmatprep.subr.mxu0 0.0
    %758 = vmatpush1.msra.mxu0 0.0
    %759 = vmatprep.subr.mxu0 0.0
    %760 = vmatpush1.msra.mxu0 0.0
    %761 = vmatprep.mubr.f32.mxu0 0.0
    %762 = vmatmul.mubr.f32.gmra.mrb[0].mxu0 %v673
    %v763 = vpop.f32.mrb[0].mxu0
    %v764 = vadd.f32 %v695, %v763
    %v765 = vpop.f32.mrb[0].mxu0
    %766 = vdwg.mxu0
    %v767 = vmax.f32 %v764, 0.0
    %v768 = vand.u32 2147483647, %v764
    %v769 = vsub.f32 0.0, %v768
    %v770 = vmul.f32 %v769, 1.442695
    %v771 = vpow.pop %v770
    %v772 = vadd.f32 %v771, 1.0
    %v773 = vlog2.pop %v772
    %v774 = vmul.f32 %v773, 0.6931472
    %v775 = vmul.f32 -0.5, %v771
    %v776 = vadd.f32 %v775, 1.0
    %v777 = vmul.f32 %v776, %v771
    %v778 = vand.u32 2147483647, %v771
    %vm779 = vcmp.lt.f32.partialorder %v778, 0.0004427343
    %v780 = vsel %vm779, %v777, %v774
    %v781 = vadd.f32 %v767, %v780
    %v782 = vlaneseq
    %v783 = vand.u32 %v782, 127
    %vm784 = vcmp.ge.s32.totalorder %v783, 6
    %vm785 = vcmp.lt.s32.totalorder %v783, 12
    %vm786 = vmand %vm784, %vm785
    %v787 = vsel %vm786, 1, 0
    %vm788 = vcmp.eq.s32.totalorder %v787, 1
    %v789 = vsel %vm788, %v781, %v764
    %790 = vst [vmem:[#allocation11] sm:$0xff] %v789
    // Predicated region
    $region58: #{tpu_custom_call.1} parent=1 // pred_check
      _
    $region59: #{tpu_custom_call.1} parent=1 // pred_check_branch
      %792 = sbr.rel (0) target = $region61
    $region60: #{tpu_custom_call.1} parent=1 // pred_region
      %s794 = ssub.s32 128, 128
      %795 = vsyncadd [#allocation4], %s794
      %s797 = sshll.u32 [#allocation11], 4
      %s798 = int_to_ptr.vmem [resolvable:$true] %s797
      %800 = dma.vmem_to_hbm [thread:$0]  %s798, 128, %s9, [#allocation4]
    $region61: #{tpu_custom_call.1} parent=1 // pred_fallthru
      _
    // Predicated region
    $region62: #{tpu_custom_call.1} parent=1 // pred_check
      _
    $region63: #{tpu_custom_call.1} parent=1 // pred_check_branch
      %802 = sbr.rel (0) target = $region65
    $region64: #{tpu_custom_call.1} parent=1 // pred_region
      %803 = dma.done [#allocation4], 128
    $region65: #{tpu_custom_call.1} parent=1 // pred_fallthru
      _
    %804 = vsyncpa [#allocation3], 1
    %805 = vsyncpa [#allocation6], 1
    %806 = vsyncpa [#allocation9], 1
    %807 = vsyncpa [#allocation4], 1

// kernel: tpu_custom_call.1
$region0: #{tpu_custom_call.1}
  #allocation0 [shape = 'u32[]', space=smem, size = 0x4, offset = 0x4, fixed_abs, tag = 'smem constant byte address 0x4 - core index']
  #allocation1 [shape = 'u32[144,128]{1,0:T(1,128)}', space=vmem, size = 0x12000, scoped, tag = 'internal scratch']
  %s0 = inlined_call_operand.hbm [shape: f32[8,16], index: 0, kind: input, shape index: {}]
  %s1 = inlined_call_operand.hbm [shape: f32[16,512], index: 1, kind: input, shape index: {}]
  %s2 = inlined_call_operand.vmem [shape: f32[1,512], index: 2, kind: input, shape index: {}]
  %s3 = inlined_call_operand.hbm [shape: f32[512,256], index: 3, kind: input, shape index: {}]
  %s4 = inlined_call_operand.vmem [shape: f32[1,256], index: 4, kind: input, shape index: {}]
  %s5 = inlined_call_operand.hbm [shape: f32[256,128], index: 5, kind: input, shape index: {}]
  %s6 = inlined_call_operand.vmem [shape: f32[1,128], index: 6, kind: input, shape index: {}]
  %s7 = inlined_call_operand.hbm [shape: f32[128,128], index: 7, kind: input, shape index: {}]
  %s8 = inlined_call_operand.vmem [shape: f32[1,128], index: 8, kind: input, shape index: {}]
  %s9 = inlined_call_operand.hbm [shape: f32[8,128], index: 9, kind: output, shape index: {}]
  %s10 = sld [smem:[#allocation0]]
  $region66: #{tpu_custom_call.1} parent=0
    _
  %s12 = ssub.s32 1, %s10
  %s13 = scalar_select 0, %s12, %s10
  $region1: #{tpu_custom_call.1} parent=0
    #allocation2 [shape = 'u8[4096]{0}', space=vmem, size = 0x1000, scoped, tag = 'input window, operand 0, single buffered']
    #allocation3 [shape = 's32[1]{0}', space=sflag, size = 0x4, scoped, tag = 'scoped memory for tpu_custom_call.1']
    #allocation4 [shape = 's32[1]{0}', space=sflag, size = 0x4, scoped, tag = 'scoped memory for tpu_custom_call.1']
    #allocation5 [shape = 'u8[32768]{0}', space=vmem, size = 0x8000, scoped, tag = 'input window, operand 1, single buffered']
    #allocation6 [shape = 's32[1]{0}', space=sflag, size = 0x4, scoped, tag = 'scoped memory for tpu_custom_call.1']
    #allocation7 [shape = 'u8[524288]{0}', space=vmem, size = 0x80000, scoped, tag = 'input window, operand 3, single buffered']
    #allocation8 [shape = 'u8[131072]{0}', space=vmem, size = 0x20000, scoped, tag = 'input window, operand 5, single buffered']
    #allocation9 [shape = 's32[1]{0}', space=sflag, size = 0x4, scoped, tag = 'scoped memory for tpu_custom_call.1']
    #allocation10 [shape = 'u8[65536]{0}', space=vmem, size = 0x10000, scoped, tag = 'input window, operand 7, single buffered']
    #allocation11 [shape = 'u8[4096]{0}', space=vmem, size = 0x1000, scoped, tag = 'output window, operand 0, single buffered']
    %14 = vsyncpa [#allocation3], 0
    %15 = vsyncpa [#allocation6], 0
    %16 = vsyncpa [#allocation9], 0
    %17 = vsyncpa [#allocation4], 0
    // Predicated region
    $region2: #{tpu_custom_call.1} parent=1 // pred_check
      _
    $region3: #{tpu_custom_call.1} parent=1 // pred_check_branch
      %19 = sbr.rel (0) target = $region5
    $region4: #{tpu_custom_call.1} parent=1 // pred_region
      %s21 = ssub.s32 128, 128
      %22 = vsyncadd [#allocation3], %s21
      %s24 = sshll.u32 [#allocation2], 4
      %s25 = int_to_ptr.vmem [resolvable:$true] %s24
      %27 = dma.hbm_to_vmem [thread:$0]  %s0, 128, %s25, [#allocation3]
    $region5: #{tpu_custom_call.1} parent=1 // pred_fallthru
      _
    // Predicated region
    $region6: #{tpu_custom_call.1} parent=1 // pred_check
      _
    $region7: #{tpu_custom_call.1} parent=1 // pred_check_branch
      %29 = sbr.rel (0) target = $region9
    $region8: #{tpu_custom_call.1} parent=1 // pred_region
      %s31 = ssub.s32 1024, 1024
      %32 = vsyncadd [#allocation6], %s31
      %s33 = sshll.u32 [#allocation5], 4
      %s34 = int_to_ptr.vmem [resolvable:$true] %s33
      %39 = dma.hbm_to_vmem [thread:$0]  %s1, 1024, %s34, [#allocation6], 512, 512, 32
    $region9: #{tpu_custom_call.1} parent=1 // pred_fallthru
      _
    // Predicated region
    $region10: #{tpu_custom_call.1} parent=1 // pred_check
      _
    $region11: #{tpu_custom_call.1} parent=1 // pred_check_branch
      %41 = sbr.rel (0) target = $region13
    $region12: #{tpu_custom_call.1} parent=1 // pred_region
      _
    $region13: #{tpu_custom_call.1} parent=1 // pred_fallthru
      _
    // Predicated region
    $region14: #{tpu_custom_call.1} parent=1 // pred_check
      _
    $region15: #{tpu_custom_call.1} parent=1 // pred_check_branch
      %43 = sbr.rel (0) target = $region17
    $region16: #{tpu_custom_call.1} parent=1 // pred_region
      %s45 = ssub.s32 16384, 16384
      %46 = vsyncadd [#allocation6], %s45
      %s47 = sshll.u32 [#allocation7], 4
      %s48 = int_to_ptr.vmem [resolvable:$true] %s47
      %53 = dma.hbm_to_vmem [thread:$0]  %s3, 16384, %s48, [#allocation6], 256, 256, 16
    $region17: #{tpu_custom_call.1} parent=1 // pred_fallthru
      _
    // Predicated region
    $region18: #{tpu_custom_call.1} parent=1 // pred_check
      _
    $region19: #{tpu_custom_call.1} parent=1 // pred_check_branch
      %55 = sbr.rel (0) target = $region21
    $region20: #{tpu_custom_call.1} parent=1 // pred_region
      _
    $region21: #{tpu_custom_call.1} parent=1 // pred_fallthru
      _
    // Predicated region
    $region22: #{tpu_custom_call.1} parent=1 // pred_check
      _
    $region23: #{tpu_custom_call.1} parent=1 // pred_check_branch
      %57 = sbr.rel (0) target = $region25
    $region24: #{tpu_custom_call.1} parent=1 // pred_region
      %s59 = ssub.s32 4096, 4096
      %60 = vsyncadd [#allocation9], %s59
      %s61 = sshll.u32 [#allocation8], 4
      %s62 = int_to_ptr.vmem [resolvable:$true] %s61
      %67 = dma.hbm_to_vmem [thread:$0]  %s5, 4096, %s62, [#allocation9], 128, 128, 8
    $region25: #{tpu_custom_call.1} parent=1 // pred_fallthru
      _
    // Predicated region
    $region26: #{tpu_custom_call.1} parent=1 // pred_check
      _
    $region27: #{tpu_custom_call.1} parent=1 // pred_check_branch
      %69 = sbr.rel (0) target = $region29
    $region28: #{tpu_custom_call.1} parent=1 // pred_region
      _
    $region29: #{tpu_custom_call.1} parent=1 // pred_fallthru
      _
    // Predicated region
    $region30: #{tpu_custom_call.1} parent=1 // pred_check
      _
    $region31: #{tpu_custom_call.1} parent=1 // pred_check_branch
      %71 = sbr.rel (0) target = $region33
    $region32: #{tpu_custom_call.1} parent=1 // pred_region
      %s73 = ssub.s32 2048, 2048
      %74 = vsyncadd [#allocation9], %s73
      %s75 = sshll.u32 [#allocation10], 4
      %s76 = int_to_ptr.vmem [resolvable:$true] %s75
      %81 = dma.hbm_to_vmem [thread:$0]  %s7, 2048, %s76, [#allocation9], 128, 128, 8
    $region33: #{tpu_custom_call.1} parent=1 // pred_fallthru
      _
    // Predicated region
    $region34: #{tpu_custom_call.1} parent=1 // pred_check
      _
    $region35: #{tpu_custom_call.1} parent=1 // pred_check_branch
      %83 = sbr.rel (0) target = $region37
    $region36: #{tpu_custom_call.1} parent=1 // pred_region
      _
    $region37: #{tpu_custom_call.1} parent=1 // pred_fallthru
      _
    // Predicated region
    $region38: #{tpu_custom_call.1} parent=1 // pred_check
      _
    $region39: #{tpu_custom_call.1} parent=1 // pred_check_branch
      %85 = sbr.rel (0) target = $region41
    $region40: #{tpu_custom_call.1} parent=1 // pred_region
      %86 = dma.done [#allocation3], 128
    $region41: #{tpu_custom_call.1} parent=1 // pred_fallthru
      _
    // Predicated region
    $region42: #{tpu_custom_call.1} parent=1 // pred_check
      _
    $region43: #{tpu_custom_call.1} parent=1 // pred_check_branch
      %88 = sbr.rel (0) target = $region45
    $region44: #{tpu_custom_call.1} parent=1 // pred_region
      %89 = dma.done [#allocation6], 1024
    $region45: #{tpu_custom_call.1} parent=1 // pred_fallthru
      _
    // Predicated region
    $region46: #{tpu_custom_call.1} parent=1 // pred_check
      _
    $region47: #{tpu_custom_call.1} parent=1 // pred_check_branch
      %91 = sbr.rel (0) target = $region49
    $region48: #{tpu_custom_call.1} parent=1 // pred_region
      %92 = dma.done [#allocation6], 16384
    $region49: #{tpu_custom_call.1} parent=1 // pred_fallthru
      _
    // Predicated region
    $region50: #{tpu_custom_call.1} parent=1 // pred_check
      _
    $region51: #{tpu_custom_call.1} parent=1 // pred_check_branch
      %94 = sbr.rel (0) target = $region53
    $region52: #{tpu_custom_call.1} parent=1 // pred_region
      %95 = dma.done [#allocation9], 4096
    $region53: #{tpu_custom_call.1} parent=1 // pred_fallthru
      _
    // Predicated region
    $region54: #{tpu_custom_call.1} parent=1 // pred_check
      _
    $region55: #{tpu_custom_call.1} parent=1 // pred_check_branch
      %97 = sbr.rel (0) target = $region57
    $region56: #{tpu_custom_call.1} parent=1 // pred_region
      %98 = dma.done [#allocation9], 2048
    $region57: #{tpu_custom_call.1} parent=1 // pred_fallthru
      _
    %v99 = vld [vmem:[#allocation2] sm:$0xff]
    %v100 = vld [vmem:[#allocation5] sm:$0xff]
    %v101 = vld [vmem:[#allocation5 + $0x8] sm:$0xff]
    %v102 = vld [vmem:[#allocation5 + $0x10] sm:$0xff]
    %v103 = vld [vmem:[#allocation5 + $0x18] sm:$0xff]
    %v104 = vld [vmem:[#allocation5 + $0x20] sm:$0xff]
    %v105 = vld [vmem:[#allocation5 + $0x28] sm:$0xff]
    %v106 = vld [vmem:[#allocation5 + $0x30] sm:$0xff]
    %v107 = vld [vmem:[#allocation5 + $0x38] sm:$0xff]
    %v108 = vld [vmem:[%s2] sm:$0xf]
    %v110 = vlaneseq
    %v111 = vshrl.u32 %v110, 7
    %v112 = vsub.s32 0, %v111
    %v113 = vrot.slane %v108, %v112
    %v114 = vlaneseq
    %v115 = vshrl.u32 %v114, 7
    %v116 = vsub.s32 1, %v115
    %v117 = vrot.slane %v108, %v116
    %v118 = vlaneseq
    %v119 = vshrl.u32 %v118, 7
    %v120 = vsub.s32 2, %v119
    %v121 = vrot.slane %v108, %v120
    %v122 = vlaneseq
    %v123 = vshrl.u32 %v122, 7
    %v124 = vsub.s32 3, %v123
    %v125 = vrot.slane %v108, %v124
    %vm130 = vcmask 130048
    %v132 = vsel %vm130, %v99, 0
    %134 = vmatprep.subr.mxu0 %v101
    %135 = vmatpush1.msra.mxu0 %v100
    %136 = vmatprep.subr.mxu0 %v105
    %137 = vmatpush1.msra.mxu0 %v104
    %138 = vmatprep.subr.mxu0 0.0
    %139 = vmatpush1.msra.mxu0 0.0
    %140 = vmatprep.subr.mxu0 0.0
    %141 = vmatpush1.msra.mxu0 0.0
    %142 = vmatprep.subr.mxu0 0.0
    %143 = vmatpush1.msra.mxu0 0.0
    %144 = vmatprep.subr.mxu0 0.0
    %145 = vmatpush1.msra.mxu0 0.0
    %146 = vmatprep.subr.mxu0 0.0
    %147 = vmatpush1.msra.mxu0 0.0
    %148 = vmatprep.subr.mxu0 0.0
    %149 = vmatpush1.msra.mxu0 0.0
    %150 = vmatprep.subr.mxu0 0.0
    %151 = vmatpush1.msra.mxu0 0.0
    %152 = vmatprep.subr.mxu0 0.0
    %153 = vmatpush1.msra.mxu0 0.0
    %154 = vmatprep.subr.mxu0 0.0
    %155 = vmatpush1.msra.mxu0 0.0
    %156 = vmatprep.subr.mxu0 0.0
    %157 = vmatpush1.msra.mxu0 0.0
    %158 = vmatprep.subr.mxu0 0.0
    %159 = vmatpush1.msra.mxu0 0.0
    %160 = vmatprep.subr.mxu0 0.0
    %161 = vmatpush1.msra.mxu0 0.0
    %162 = vmatprep.subr.mxu0 0.0
    %163 = vmatpush1.msra.mxu0 0.0
    %164 = vmatprep.subr.mxu0 0.0
    %165 = vmatpush1.msra.mxu0 0.0
    %166 = vmatprep.subr.mxu0 0.0
    %167 = vmatpush1.msra.mxu0 0.0
    %168 = vmatprep.subr.mxu0 0.0
    %169 = vmatpush1.msra.mxu0 0.0
    %170 = vmatprep.subr.mxu0 0.0
    %171 = vmatpush1.msra.mxu0 0.0
    %172 = vmatprep.subr.mxu0 0.0
    %173 = vmatpush1.msra.mxu0 0.0
    %174 = vmatprep.subr.mxu0 0.0
    %175 = vmatpush1.msra.mxu0 0.0
    %176 = vmatprep.subr.mxu0 0.0
    %177 = vmatpush1.msra.mxu0 0.0
    %178 = vmatprep.subr.mxu0 0.0
    %179 = vmatpush1.msra.mxu0 0.0
    %180 = vmatprep.subr.mxu0 0.0
    %181 = vmatpush1.msra.mxu0 0.0
    %182 = vmatprep.subr.mxu0 0.0
    %183 = vmatpush1.msra.mxu0 0.0
    %184 = vmatprep.subr.mxu0 0.0
    %185 = vmatpush1.msra.mxu0 0.0
    %186 = vmatprep.subr.mxu0 0.0
    %187 = vmatpush1.msra.mxu0 0.0
    %188 = vmatprep.subr.mxu0 0.0
    %189 = vmatpush1.msra.mxu0 0.0
    %190 = vmatprep.subr.mxu0 0.0
    %191 = vmatpush1.msra.mxu0 0.0
    %192 = vmatprep.subr.mxu0 0.0
    %193 = vmatpush1.msra.mxu0 0.0
    %194 = vmatprep.subr.mxu0 0.0
    %195 = vmatpush1.msra.mxu0 0.0
    %196 = vmatprep.subr.mxu0 0.0
    %197 = vmatpush1.msra.mxu0 0.0
    %198 = vmatprep.mubr.f32.mxu0 0.0
    %199 = vmatmul.mubr.f32.gmra.mrb[0].mxu0 %v132
    %v200 = vpop.f32.mrb[0].mxu0
    %v201 = vadd.f32 %v113, %v200
    %v202 = vpop.f32.mrb[0].mxu0
    %v203 = vadd.f32 %v117, %v202
    %204 = vdwg.mxu0
    %205 = vmatprep.subr.mxu0 %v103
    %206 = vmatpush1.msra.mxu0 %v102
    %207 = vmatprep.subr.mxu0 %v107
    %208 = vmatpush1.msra.mxu0 %v106
    %209 = vmatprep.subr.mxu0 0.0
    %210 = vmatpush1.msra.mxu0 0.0
    %211 = vmatprep.subr.mxu0 0.0
    %212 = vmatpush1.msra.mxu0 0.0
    %213 = vmatprep.subr.mxu0 0.0
    %214 = vmatpush1.msra.mxu0 0.0
    %215 = vmatprep.subr.mxu0 0.0
    %216 = vmatpush1.msra.mxu0 0.0
    %217 = vmatprep.subr.mxu0 0.0
    %218 = vmatpush1.msra.mxu0 0.0
    %219 = vmatprep.subr.mxu0 0.0
    %220 = vmatpush1.msra.mxu0 0.0
    %221 = vmatprep.subr.mxu0 0.0
    %222 = vmatpush1.msra.mxu0 0.0
    %223 = vmatprep.subr.mxu0 0.0
    %224 = vmatpush1.msra.mxu0 0.0
    %225 = vmatprep.subr.mxu0 0.0
    %226 = vmatpush1.msra.mxu0 0.0
    %227 = vmatprep.subr.mxu0 0.0
    %228 = vmatpush1.msra.mxu0 0.0
    %229 = vmatprep.subr.mxu0 0.0
    %230 = vmatpush1.msra.mxu0 0.0
    %231 = vmatprep.subr.mxu0 0.0
    %232 = vmatpush1.msra.mxu0 0.0
    %233 = vmatprep.subr.mxu0 0.0
    %234 = vmatpush1.msra.mxu0 0.0
    %235 = vmatprep.subr.mxu0 0.0
    %236 = vmatpush1.msra.mxu0 0.0
    %237 = vmatprep.subr.mxu0 0.0
    %238 = vmatpush1.msra.mxu0 0.0
    %239 = vmatprep.subr.mxu0 0.0
    %240 = vmatpush1.msra.mxu0 0.0
    %241 = vmatprep.subr.mxu0 0.0
    %242 = vmatpush1.msra.mxu0 0.0
    %243 = vmatprep.subr.mxu0 0.0
    %244 = vmatpush1.msra.mxu0 0.0
    %245 = vmatprep.subr.mxu0 0.0
    %246 = vmatpush1.msra.mxu0 0.0
    %247 = vmatprep.subr.mxu0 0.0
    %248 = vmatpush1.msra.mxu0 0.0
    %249 = vmatprep.subr.mxu0 0.0
    %250 = vmatpush1.msra.mxu0 0.0
    %251 = vmatprep.subr.mxu0 0.0
    %252 = vmatpush1.msra.mxu0 0.0
    %253 = vmatprep.subr.mxu0 0.0
    %254 = vmatpush1.msra.mxu0 0.0
    %255 = vmatprep.subr.mxu0 0.0
    %256 = vmatpush1.msra.mxu0 0.0
    %257 = vmatprep.subr.mxu0 0.0
    %258 = vmatpush1.msra.mxu0 0.0
    %259 = vmatprep.subr.mxu0 0.0
    %260 = vmatpush1.msra.mxu0 0.0
    %261 = vmatprep.subr.mxu0 0.0
    %262 = vmatpush1.msra.mxu0 0.0
    %263 = vmatprep.subr.mxu0 0.0
    %264 = vmatpush1.msra.mxu0 0.0
    %265 = vmatprep.subr.mxu0 0.0
    %266 = vmatpush1.msra.mxu0 0.0
    %267 = vmatprep.subr.mxu0 0.0
    %268 = vmatpush1.msra.mxu0 0.0
    %269 = vmatprep.mubr.f32.mxu0 0.0
    %270 = vmatmul.mubr.f32.gmra.mrb[0].mxu0 %v132
    %v271 = vpop.f32.mrb[0].mxu0
    %v272 = vadd.f32 %v121, %v271
    %v273 = vpop.f32.mrb[0].mxu0
    %v274 = vadd.f32 %v125, %v273
    %275 = vdwg.mxu0
    %v276 = vtanh.pop %v201
    %v277 = vtanh.pop %v203
    %v278 = vtanh.pop %v272
    %v279 = vtanh.pop %v274
    %v280 = vld [vmem:[#allocation7] sm:$0xff]
    %v281 = vld [vmem:[#allocation7 + $0x8] sm:$0xff]
    %v282 = vld [vmem:[#allocation7 + $0x10] sm:$0xff]
    %v283 = vld [vmem:[#allocation7 + $0x18] sm:$0xff]
    %v284 = vld [vmem:[#allocation7 + $0x20] sm:$0xff]
    %v285 = vld [vmem:[#allocation7 + $0x28] sm:$0xff]
    %v286 = vld [vmem:[#allocation7 + $0x30] sm:$0xff]
    %v287 = vld [vmem:[#allocation7 + $0x38] sm:$0xff]
    %v288 = vld [vmem:[#allocation7 + $0x40] sm:$0xff]
    %v289 = vld [vmem:[#allocation7 + $0x48] sm:$0xff]
    %v290 = vld [vmem:[#allocation7 + $0x50] sm:$0xff]
    %v291 = vld [vmem:[#allocation7 + $0x58] sm:$0xff]
    %v292 = vld [vmem:[#allocation7 + $0x60] sm:$0xff]
    %v293 = vld [vmem:[#allocation7 + $0x68] sm:$0xff]
    %v294 = vld [vmem:[#allocation7 + $0x70] sm:$0xff]
    %v295 = vld [vmem:[#allocation7 + $0x78] sm:$0xff]
    %v296 = vld [vmem:[#allocation7 + $0x80] sm:$0xff]
    %v297 = vld [vmem:[#allocation7 + $0x88] sm:$0xff]
    %v298 = vld [vmem:[#allocation7 + $0x90] sm:$0xff]
    %v299 = vld [vmem:[#allocation7 + $0x98] sm:$0xff]
    %v300 = vld [vmem:[#allocation7 + $0xa0] sm:$0xff]
    %v301 = vld [vmem:[#allocation7 + $0xa8] sm:$0xff]
    %v302 = vld [vmem:[#allocation7 + $0xb0] sm:$0xff]
    %v303 = vld [vmem:[#allocation7 + $0xb8] sm:$0xff]
    %v304 = vld [vmem:[#allocation7 + $0xc0] sm:$0xff]
    %v305 = vld [vmem:[#allocation7 + $0xc8] sm:$0xff]
    %v306 = vld [vmem:[#allocation7 + $0xd0] sm:$0xff]
    %v307 = vld [vmem:[#allocation7 + $0xd8] sm:$0xff]
    %v308 = vld [vmem:[#allocation7 + $0xe0] sm:$0xff]
    %v309 = vld [vmem:[#allocation7 + $0xe8] sm:$0xff]
    %v310 = vld [vmem:[#allocation7 + $0xf0] sm:$0xff]
    %v311 = vld [vmem:[#allocation7 + $0xf8] sm:$0xff]
    %v312 = vld [vmem:[#allocation7 + $0x100] sm:$0xff]
    %v313 = vld [vmem:[#allocation7 + $0x108] sm:$0xff]
    %v314 = vld [vmem:[#allocation7 + $0x110] sm:$0xff]
    %v315 = vld [vmem:[#allocation7 + $0x118] sm:$0xff]
    %v316 = vld [vmem:[#allocation7 + $0x120] sm:$0xff]
    %v317 = vld [vmem:[#allocation7 + $0x128] sm:$0xff]
    %v318 = vld [vmem:[#allocation7 + $0x130] sm:$0xff]
    %v319 = vld [vmem:[#allocation7 + $0x138] sm:$0xff]
    %v320 = vld [vmem:[#allocation7 + $0x140] sm:$0xff]
    %v321 = vld [vmem:[#allocation7 + $0x148] sm:$0xff]
    %v322 = vld [vmem:[#allocation7 + $0x150] sm:$0xff]
    %v323 = vld [vmem:[#allocation7 + $0x158] sm:$0xff]
    %v324 = vld [vmem:[#allocation7 + $0x160] sm:$0xff]
    %v325 = vld [vmem:[#allocation7 + $0x168] sm:$0xff]
    %v326 = vld [vmem:[#allocation7 + $0x170] sm:$0xff]
    %v327 = vld [vmem:[#allocation7 + $0x178] sm:$0xff]
    %v328 = vld [vmem:[#allocation7 + $0x180] sm:$0xff]
    %v329 = vld [vmem:[#allocation7 + $0x188] sm:$0xff]
    %v330 = vld [vmem:[#allocation7 + $0x190] sm:$0xff]
    %v331 = vld [vmem:[#allocation7 + $0x198] sm:$0xff]
    %v332 = vld [vmem:[#allocation7 + $0x1a0] sm:$0xff]
    %v333 = vld [vmem:[#allocation7 + $0x1a8] sm:$0xff]
    %v334 = vld [vmem:[#allocation7 + $0x1b0] sm:$0xff]
    %v335 = vld [vmem:[#allocation7 + $0x1b8] sm:$0xff]
    %v336 = vld [vmem:[#allocation7 + $0x1c0] sm:$0xff]
    %v337 = vld [vmem:[#allocation7 + $0x1c8] sm:$0xff]
    %v338 = vld [vmem:[#allocation7 + $0x1d0] sm:$0xff]
    %v339 = vld [vmem:[#allocation7 + $0x1d8] sm:$0xff]
    %v340 = vld [vmem:[#allocation7 + $0x1e0] sm:$0xff]
    %v341 = vld [vmem:[#allocation7 + $0x1e8] sm:$0xff]
    %v342 = vld [vmem:[#allocation7 + $0x1f0] sm:$0xff]
    %v343 = vld [vmem:[#allocation7 + $0x1f8] sm:$0xff]
    %v344 = vld [vmem:[#allocation7 + $0x200] sm:$0xff]
    %v345 = vld [vmem:[#allocation7 + $0x208] sm:$0xff]
    %v346 = vld [vmem:[#allocation7 + $0x210] sm:$0xff]
    %v347 = vld [vmem:[#allocation7 + $0x218] sm:$0xff]
    %v348 = vld [vmem:[#allocation7 + $0x220] sm:$0xff]
    %v349 = vld [vmem:[#allocation7 + $0x228] sm:$0xff]
    %v350 = vld [vmem:[#allocation7 + $0x230] sm:$0xff]
    %v351 = vld [vmem:[#allocation7 + $0x238] sm:$0xff]
    %v352 = vld [vmem:[#allocation7 + $0x240] sm:$0xff]
    %v353 = vld [vmem:[#allocation7 + $0x248] sm:$0xff]
    %v354 = vld [vmem:[#allocation7 + $0x250] sm:$0xff]
    %v355 = vld [vmem:[#allocation7 + $0x258] sm:$0xff]
    %v356 = vld [vmem:[#allocation7 + $0x260] sm:$0xff]
    %v357 = vld [vmem:[#allocation7 + $0x268] sm:$0xff]
    %v358 = vld [vmem:[#allocation7 + $0x270] sm:$0xff]
    %v359 = vld [vmem:[#allocation7 + $0x278] sm:$0xff]
    %v360 = vld [vmem:[#allocation7 + $0x280] sm:$0xff]
    %v361 = vld [vmem:[#allocation7 + $0x288] sm:$0xff]
    %v362 = vld [vmem:[#allocation7 + $0x290] sm:$0xff]
    %v363 = vld [vmem:[#allocation7 + $0x298] sm:$0xff]
    %v364 = vld [vmem:[#allocation7 + $0x2a0] sm:$0xff]
    %v365 = vld [vmem:[#allocation7 + $0x2a8] sm:$0xff]
    %v366 = vld [vmem:[#allocation7 + $0x2b0] sm:$0xff]
    %v367 = vld [vmem:[#allocation7 + $0x2b8] sm:$0xff]
    %v368 = vld [vmem:[#allocation7 + $0x2c0] sm:$0xff]
    %v369 = vld [vmem:[#allocation7 + $0x2c8] sm:$0xff]
    %v370 = vld [vmem:[#allocation7 + $0x2d0] sm:$0xff]
    %v371 = vld [vmem:[#allocation7 + $0x2d8] sm:$0xff]
    %v372 = vld [vmem:[#allocation7 + $0x2e0] sm:$0xff]
    %v373 = vld [vmem:[#allocation7 + $0x2e8] sm:$0xff]
    %v374 = vld [vmem:[#allocation7 + $0x2f0] sm:$0xff]
    %v375 = vld [vmem:[#allocation7 + $0x2f8] sm:$0xff]
    %v376 = vld [vmem:[#allocation7 + $0x300] sm:$0xff]
    %v377 = vld [vmem:[#allocation7 + $0x308] sm:$0xff]
    %v378 = vld [vmem:[#allocation7 + $0x310] sm:$0xff]
    %v379 = vld [vmem:[#allocation7 + $0x318] sm:$0xff]
    %v380 = vld [vmem:[#allocation7 + $0x320] sm:$0xff]
    %v381 = vld [vmem:[#allocation7 + $0x328] sm:$0xff]
    %v382 = vld [vmem:[#allocation7 + $0x330] sm:$0xff]
    %v383 = vld [vmem:[#allocation7 + $0x338] sm:$0xff]
    %v384 = vld [vmem:[#allocation7 + $0x340] sm:$0xff]
    %v385 = vld [vmem:[#allocation7 + $0x348] sm:$0xff]
    %v386 = vld [vmem:[#allocation7 + $0x350] sm:$0xff]
    %v387 = vld [vmem:[#allocation7 + $0x358] sm:$0xff]
    %v388 = vld [vmem:[#allocation7 + $0x360] sm:$0xff]
    %v389 = vld [vmem:[#allocation7 + $0x368] sm:$0xff]
    %v390 = vld [vmem:[#allocation7 + $0x370] sm:$0xff]
    %v391 = vld [vmem:[#allocation7 + $0x378] sm:$0xff]
    %v392 = vld [vmem:[#allocation7 + $0x380] sm:$0xff]
    %v393 = vld [vmem:[#allocation7 + $0x388] sm:$0xff]
    %v394 = vld [vmem:[#allocation7 + $0x390] sm:$0xff]
    %v395 = vld [vmem:[#allocation7 + $0x398] sm:$0xff]
    %v396 = vld [vmem:[#allocation7 + $0x3a0] sm:$0xff]
    %v397 = vld [vmem:[#allocation7 + $0x3a8] sm:$0xff]
    %v398 = vld [vmem:[#allocation7 + $0x3b0] sm:$0xff]
    %v399 = vld [vmem:[#allocation7 + $0x3b8] sm:$0xff]
    %v400 = vld [vmem:[#allocation7 + $0x3c0] sm:$0xff]
    %v401 = vld [vmem:[#allocation7 + $0x3c8] sm:$0xff]
    %v402 = vld [vmem:[#allocation7 + $0x3d0] sm:$0xff]
    %v403 = vld [vmem:[#allocation7 + $0x3d8] sm:$0xff]
    %v404 = vld [vmem:[#allocation7 + $0x3e0] sm:$0xff]
    %v405 = vld [vmem:[#allocation7 + $0x3e8] sm:$0xff]
    %v406 = vld [vmem:[#allocation7 + $0x3f0] sm:$0xff]
    %v407 = vld [vmem:[#allocation7 + $0x3f8] sm:$0xff]
    %v408 = vld [vmem:[%s4] sm:$0x3]
    %v410 = vlaneseq
    %v411 = vshrl.u32 %v410, 7
    %v412 = vsub.s32 0, %v411
    %v413 = vrot.slane %v408, %v412
    %v414 = vlaneseq
    %v415 = vshrl.u32 %v414, 7
    %v416 = vsub.s32 1, %v415
    %v417 = vrot.slane %v408, %v416
    %420 = vmatprep.subr.mxu0 %v281
    %421 = vmatpush1.msra.mxu0 %v280
    %422 = vmatprep.subr.mxu0 %v283
    %423 = vmatpush1.msra.mxu0 %v282
    %424 = vmatprep.subr.mxu0 %v285
    %425 = vmatpush1.msra.mxu0 %v284
    %426 = vmatprep.subr.mxu0 %v287
    %427 = vmatpush1.msra.mxu0 %v286
    %428 = vmatprep.subr.mxu0 %v289
    %429 = vmatpush1.msra.mxu0 %v288
    %430 = vmatprep.subr.mxu0 %v291
    %431 = vmatpush1.msra.mxu0 %v290
    %432 = vmatprep.subr.mxu0 %v293
    %433 = vmatpush1.msra.mxu0 %v292
    %434 = vmatprep.subr.mxu0 %v295
    %435 = vmatpush1.msra.mxu0 %v294
    %436 = vmatprep.subr.mxu0 %v297
    %437 = vmatpush1.msra.mxu0 %v296
    %438 = vmatprep.subr.mxu0 %v299
    %439 = vmatpush1.msra.mxu0 %v298
    %440 = vmatprep.subr.mxu0 %v301
    %441 = vmatpush1.msra.mxu0 %v300
    %442 = vmatprep.subr.mxu0 %v303
    %443 = vmatpush1.msra.mxu0 %v302
    %444 = vmatprep.subr.mxu0 %v305
    %445 = vmatpush1.msra.mxu0 %v304
    %446 = vmatprep.subr.mxu0 %v307
    %447 = vmatpush1.msra.mxu0 %v306
    %448 = vmatprep.subr.mxu0 %v309
    %449 = vmatpush1.msra.mxu0 %v308
    %450 = vmatprep.subr.mxu0 %v311
    %451 = vmatpush1.msra.mxu0 %v310
    %452 = vmatprep.subr.mxu0 %v313
    %453 = vmatpush1.msra.mxu0 %v312
    %454 = vmatprep.subr.mxu0 %v315
    %455 = vmatpush1.msra.mxu0 %v314
    %456 = vmatprep.subr.mxu0 %v317
    %457 = vmatpush1.msra.mxu0 %v316
    %458 = vmatprep.subr.mxu0 %v319
    %459 = vmatpush1.msra.mxu0 %v318
    %460 = vmatprep.subr.mxu0 %v321
    %461 = vmatpush1.msra.mxu0 %v320
    %462 = vmatprep.subr.mxu0 %v323
    %463 = vmatpush1.msra.mxu0 %v322
    %464 = vmatprep.subr.mxu0 %v325
    %465 = vmatpush1.msra.mxu0 %v324
    %466 = vmatprep.subr.mxu0 %v327
    %467 = vmatpush1.msra.mxu0 %v326
    %468 = vmatprep.subr.mxu0 %v329
    %469 = vmatpush1.msra.mxu0 %v328
    %470 = vmatprep.subr.mxu0 %v331
    %471 = vmatpush1.msra.mxu0 %v330
    %472 = vmatprep.subr.mxu0 %v333
    %473 = vmatpush1.msra.mxu0 %v332
    %474 = vmatprep.subr.mxu0 %v335
    %475 = vmatpush1.msra.mxu0 %v334
    %476 = vmatprep.subr.mxu0 %v337
    %477 = vmatpush1.msra.mxu0 %v336
    %478 = vmatprep.subr.mxu0 %v339
    %479 = vmatpush1.msra.mxu0 %v338
    %480 = vmatprep.subr.mxu0 %v341
    %481 = vmatpush1.msra.mxu0 %v340
    %482 = vmatprep.subr.mxu0 %v343
    %483 = vmatpush1.msra.mxu0 %v342
    %484 = vmatprep.mubr.f32.mxu0 %v277
    %485 = vmatmul.mubr.f32.gmra.mrb[0].mxu0 %v276
    %v486 = vpop.f32.mrb[0].mxu0
    %v487 = vadd.f32 %v413, %v486
    %v488 = vpop.f32.mrb[0].mxu0
    %v489 = vadd.f32 %v417, %v488
    %490 = vdwg.mxu0
    %491 = vmatprep.subr.mxu0 %v345
    %492 = vmatpush1.msra.mxu0 %v344
    %493 = vmatprep.subr.mxu0 %v347
    %494 = vmatpush1.msra.mxu0 %v346
    %495 = vmatprep.subr.mxu0 %v349
    %496 = vmatpush1.msra.mxu0 %v348
    %497 = vmatprep.subr.mxu0 %v351
    %498 = vmatpush1.msra.mxu0 %v350
    %499 = vmatprep.subr.mxu0 %v353
    %500 = vmatpush1.msra.mxu0 %v352
    %501 = vmatprep.subr.mxu0 %v355
    %502 = vmatpush1.msra.mxu0 %v354
    %503 = vmatprep.subr.mxu0 %v357
    %504 = vmatpush1.msra.mxu0 %v356
    %505 = vmatprep.subr.mxu0 %v359
    %506 = vmatpush1.msra.mxu0 %v358
    %507 = vmatprep.subr.mxu0 %v361
    %508 = vmatpush1.msra.mxu0 %v360
    %509 = vmatprep.subr.mxu0 %v363
    %510 = vmatpush1.msra.mxu0 %v362
    %511 = vmatprep.subr.mxu0 %v365
    %512 = vmatpush1.msra.mxu0 %v364
    %513 = vmatprep.subr.mxu0 %v367
    %514 = vmatpush1.msra.mxu0 %v366
    %515 = vmatprep.subr.mxu0 %v369
    %516 = vmatpush1.msra.mxu0 %v368
    %517 = vmatprep.subr.mxu0 %v371
    %518 = vmatpush1.msra.mxu0 %v370
    %519 = vmatprep.subr.mxu0 %v373
    %520 = vmatpush1.msra.mxu0 %v372
    %521 = vmatprep.subr.mxu0 %v375
    %522 = vmatpush1.msra.mxu0 %v374
    %523 = vmatprep.subr.mxu0 %v377
    %524 = vmatpush1.msra.mxu0 %v376
    %525 = vmatprep.subr.mxu0 %v379
    %526 = vmatpush1.msra.mxu0 %v378
    %527 = vmatprep.subr.mxu0 %v381
    %528 = vmatpush1.msra.mxu0 %v380
    %529 = vmatprep.subr.mxu0 %v383
    %530 = vmatpush1.msra.mxu0 %v382
    %531 = vmatprep.subr.mxu0 %v385
    %532 = vmatpush1.msra.mxu0 %v384
    %533 = vmatprep.subr.mxu0 %v387
    %534 = vmatpush1.msra.mxu0 %v386
    %535 = vmatprep.subr.mxu0 %v389
    %536 = vmatpush1.msra.mxu0 %v388
    %537 = vmatprep.subr.mxu0 %v391
    %538 = vmatpush1.msra.mxu0 %v390
    %539 = vmatprep.subr.mxu0 %v393
    %540 = vmatpush1.msra.mxu0 %v392
    %541 = vmatprep.subr.mxu0 %v395
    %542 = vmatpush1.msra.mxu0 %v394
    %543 = vmatprep.subr.mxu0 %v397
    %544 = vmatpush1.msra.mxu0 %v396
    %545 = vmatprep.subr.mxu0 %v399
    %546 = vmatpush1.msra.mxu0 %v398
    %547 = vmatprep.subr.mxu0 %v401
    %548 = vmatpush1.msra.mxu0 %v400
    %549 = vmatprep.subr.mxu0 %v403
    %550 = vmatpush1.msra.mxu0 %v402
    %551 = vmatprep.subr.mxu0 %v405
    %552 = vmatpush1.msra.mxu0 %v404
    %553 = vmatprep.subr.mxu0 %v407
    %554 = vmatpush1.msra.mxu0 %v406
    %555 = vmatprep.mubr.f32.mxu0 %v279
    %556 = vmatmul.mubr.f32.gmra.mrb[0].mxu0 %v278
    %v557 = vpop.f32.mrb[0].mxu0
    %v558 = vadd.f32 %v487, %v557
    %v559 = vpop.f32.mrb[0].mxu0
    %v560 = vadd.f32 %v489, %v559
    %561 = vdwg.mxu0
    %v562 = vtanh.pop %v558
    %v563 = vtanh.pop %v560
    %v564 = vld [vmem:[#allocation8] sm:$0xff]
    %v565 = vld [vmem:[#allocation8 + $0x8] sm:$0xff]
    %v566 = vld [vmem:[#allocation8 + $0x10] sm:$0xff]
    %v567 = vld [vmem:[#allocation8 + $0x18] sm:$0xff]
    %v568 = vld [vmem:[#allocation8 + $0x20] sm:$0xff]
    %v569 = vld [vmem:[#allocation8 + $0x28] sm:$0xff]
    %v570 = vld [vmem:[#allocation8 + $0x30] sm:$0xff]
    %v571 = vld [vmem:[#allocation8 + $0x38] sm:$0xff]
    %v572 = vld [vmem:[#allocation8 + $0x40] sm:$0xff]
    %v573 = vld [vmem:[#allocation8 + $0x48] sm:$0xff]
    %v574 = vld [vmem:[#allocation8 + $0x50] sm:$0xff]
    %v575 = vld [vmem:[#allocation8 + $0x58] sm:$0xff]
    %v576 = vld [vmem:[#allocation8 + $0x60] sm:$0xff]
    %v577 = vld [vmem:[#allocation8 + $0x68] sm:$0xff]
    %v578 = vld [vmem:[#allocation8 + $0x70] sm:$0xff]
    %v579 = vld [vmem:[#allocation8 + $0x78] sm:$0xff]
    %v580 = vld [vmem:[#allocation8 + $0x80] sm:$0xff]
    %v581 = vld [vmem:[#allocation8 + $0x88] sm:$0xff]
    %v582 = vld [vmem:[#allocation8 + $0x90] sm:$0xff]
    %v583 = vld [vmem:[#allocation8 + $0x98] sm:$0xff]
    %v584 = vld [vmem:[#allocation8 + $0xa0] sm:$0xff]
    %v585 = vld [vmem:[#allocation8 + $0xa8] sm:$0xff]
    %v586 = vld [vmem:[#allocation8 + $0xb0] sm:$0xff]
    %v587 = vld [vmem:[#allocation8 + $0xb8] sm:$0xff]
    %v588 = vld [vmem:[#allocation8 + $0xc0] sm:$0xff]
    %v589 = vld [vmem:[#allocation8 + $0xc8] sm:$0xff]
    %v590 = vld [vmem:[#allocation8 + $0xd0] sm:$0xff]
    %v591 = vld [vmem:[#allocation8 + $0xd8] sm:$0xff]
    %v592 = vld [vmem:[#allocation8 + $0xe0] sm:$0xff]
    %v593 = vld [vmem:[#allocation8 + $0xe8] sm:$0xff]
    %v594 = vld [vmem:[#allocation8 + $0xf0] sm:$0xff]
    %v595 = vld [vmem:[#allocation8 + $0xf8] sm:$0xff]
    %v596 = vld [vmem:[%s6] sm:$0x1]
    %v598 = vlaneseq
    %v599 = vshrl.u32 %v598, 7
    %v600 = vsub.s32 0, %v599
    %v601 = vrot.slane %v596, %v600
    %603 = vmatprep.subr.mxu0 0.0
    %604 = vmatpush1.msra.mxu0 %v564
    %605 = vmatprep.subr.mxu0 0.0
    %606 = vmatpush1.msra.mxu0 %v565
    %607 = vmatprep.subr.mxu0 0.0
    %608 = vmatpush1.msra.mxu0 %v566
    %609 = vmatprep.subr.mxu0 0.0
    %610 = vmatpush1.msra.mxu0 %v567
    %611 = vmatprep.subr.mxu0 0.0
    %612 = vmatpush1.msra.mxu0 %v568
    %613 = vmatprep.subr.mxu0 0.0
    %614 = vmatpush1.msra.mxu0 %v569
    %615 = vmatprep.subr.mxu0 0.0
    %616 = vmatpush1.msra.mxu0 %v570
    %617 = vmatprep.subr.mxu0 0.0
    %618 = vmatpush1.msra.mxu0 %v571
    %619 = vmatprep.subr.mxu0 0.0
    %620 = vmatpush1.msra.mxu0 %v572
    %621 = vmatprep.subr.mxu0 0.0
    %622 = vmatpush1.msra.mxu0 %v573
    %623 = vmatprep.subr.mxu0 0.0
    %624 = vmatpush1.msra.mxu0 %v574
    %625 = vmatprep.subr.mxu0 0.0
    %626 = vmatpush1.msra.mxu0 %v575
    %627 = vmatprep.subr.mxu0 0.0
    %628 = vmatpush1.msra.mxu0 %v576
    %629 = vmatprep.subr.mxu0 0.0
    %630 = vmatpush1.msra.mxu0 %v577
    %631 = vmatprep.subr.mxu0 0.0
    %632 = vmatpush1.msra.mxu0 %v578
    %633 = vmatprep.subr.mxu0 0.0
    %634 = vmatpush1.msra.mxu0 %v579
    %635 = vmatprep.subr.mxu0 0.0
    %636 = vmatpush1.msra.mxu0 %v580
    %637 = vmatprep.subr.mxu0 0.0
    %638 = vmatpush1.msra.mxu0 %v581
    %639 = vmatprep.subr.mxu0 0.0
    %640 = vmatpush1.msra.mxu0 %v582
    %641 = vmatprep.subr.mxu0 0.0
    %642 = vmatpush1.msra.mxu0 %v583
    %643 = vmatprep.subr.mxu0 0.0
    %644 = vmatpush1.msra.mxu0 %v584
    %645 = vmatprep.subr.mxu0 0.0
    %646 = vmatpush1.msra.mxu0 %v585
    %647 = vmatprep.subr.mxu0 0.0
    %648 = vmatpush1.msra.mxu0 %v586
    %649 = vmatprep.subr.mxu0 0.0
    %650 = vmatpush1.msra.mxu0 %v587
    %651 = vmatprep.subr.mxu0 0.0
    %652 = vmatpush1.msra.mxu0 %v588
    %653 = vmatprep.subr.mxu0 0.0
    %654 = vmatpush1.msra.mxu0 %v589
    %655 = vmatprep.subr.mxu0 0.0
    %656 = vmatpush1.msra.mxu0 %v590
    %657 = vmatprep.subr.mxu0 0.0
    %658 = vmatpush1.msra.mxu0 %v591
    %659 = vmatprep.subr.mxu0 0.0
    %660 = vmatpush1.msra.mxu0 %v592
    %661 = vmatprep.subr.mxu0 0.0
    %662 = vmatpush1.msra.mxu0 %v593
    %663 = vmatprep.subr.mxu0 0.0
    %664 = vmatpush1.msra.mxu0 %v594
    %665 = vmatprep.subr.mxu0 0.0
    %666 = vmatpush1.msra.mxu0 %v595
    %667 = vmatprep.mubr.f32.mxu0 %v563
    %668 = vmatmul.mubr.f32.gmra.mrb[0].mxu0 %v562
    %v669 = vpop.f32.mrb[0].mxu0
    %v670 = vadd.f32 %v601, %v669
    %v671 = vpop.f32.mrb[0].mxu0
    %672 = vdwg.mxu0
    %v673 = vtanh.pop %v670
    %v674 = vld [vmem:[#allocation10] sm:$0xff]
    %v675 = vld [vmem:[#allocation10 + $0x8] sm:$0xff]
    %v676 = vld [vmem:[#allocation10 + $0x10] sm:$0xff]
    %v677 = vld [vmem:[#allocation10 + $0x18] sm:$0xff]
    %v678 = vld [vmem:[#allocation10 + $0x20] sm:$0xff]
    %v679 = vld [vmem:[#allocation10 + $0x28] sm:$0xff]
    %v680 = vld [vmem:[#allocation10 + $0x30] sm:$0xff]
    %v681 = vld [vmem:[#allocation10 + $0x38] sm:$0xff]
    %v682 = vld [vmem:[#allocation10 + $0x40] sm:$0xff]
    %v683 = vld [vmem:[#allocation10 + $0x48] sm:$0xff]
    %v684 = vld [vmem:[#allocation10 + $0x50] sm:$0xff]
    %v685 = vld [vmem:[#allocation10 + $0x58] sm:$0xff]
    %v686 = vld [vmem:[#allocation10 + $0x60] sm:$0xff]
    %v687 = vld [vmem:[#allocation10 + $0x68] sm:$0xff]
    %v688 = vld [vmem:[#allocation10 + $0x70] sm:$0xff]
    %v689 = vld [vmem:[#allocation10 + $0x78] sm:$0xff]
    %v690 = vld [vmem:[%s8] sm:$0x1]
    %v692 = vlaneseq
    %v693 = vshrl.u32 %v692, 7
    %v694 = vsub.s32 0, %v693
    %v695 = vrot.slane %v690, %v694
    %697 = vmatprep.subr.mxu0 0.0
    %698 = vmatpush1.msra.mxu0 %v674
    %699 = vmatprep.subr.mxu0 0.0
    %700 = vmatpush1.msra.mxu0 %v675
    %701 = vmatprep.subr.mxu0 0.0
    %702 = vmatpush1.msra.mxu0 %v676
    %703 = vmatprep.subr.mxu0 0.0
    %704 = vmatpush1.msra.mxu0 %v677
    %705 = vmatprep.subr.mxu0 0.0
    %706 = vmatpush1.msra.mxu0 %v678
    %707 = vmatprep.subr.mxu0 0.0
    %708 = vmatpush1.msra.mxu0 %v679
    %709 = vmatprep.subr.mxu0 0.0
    %710 = vmatpush1.msra.mxu0 %v680
    %711 = vmatprep.subr.mxu0 0.0
    %712 = vmatpush1.msra.mxu0 %v681
    %713 = vmatprep.subr.mxu0 0.0
    %714 = vmatpush1.msra.mxu0 %v682
    %715 = vmatprep.subr.mxu0 0.0
    %716 = vmatpush1.msra.mxu0 %v683
    %717 = vmatprep.subr.mxu0 0.0
    %718 = vmatpush1.msra.mxu0 %v684
    %719 = vmatprep.subr.mxu0 0.0
    %720 = vmatpush1.msra.mxu0 %v685
    %721 = vmatprep.subr.mxu0 0.0
    %722 = vmatpush1.msra.mxu0 %v686
    %723 = vmatprep.subr.mxu0 0.0
    %724 = vmatpush1.msra.mxu0 %v687
    %725 = vmatprep.subr.mxu0 0.0
    %726 = vmatpush1.msra.mxu0 %v688
    %727 = vmatprep.subr.mxu0 0.0
    %728 = vmatpush1.msra.mxu0 %v689
    %729 = vmatprep.subr.mxu0 0.0
    %730 = vmatpush1.msra.mxu0 0.0
    %731 = vmatprep.subr.mxu0 0.0
    %732 = vmatpush1.msra.mxu0 0.0
    %733 = vmatprep.subr.mxu0 0.0
    %734 = vmatpush1.msra.mxu0 0.0
    %735 = vmatprep.subr.mxu0 0.0
    %736 = vmatpush1.msra.mxu0 0.0
    %737 = vmatprep.subr.mxu0 0.0
    %738 = vmatpush1.msra.mxu0 0.0
    %739 = vmatprep.subr.mxu0 0.0
    %740 = vmatpush1.msra.mxu0 0.0
    %741 = vmatprep.subr.mxu0 0.0
    %742 = vmatpush1.msra.mxu0 0.0
    %743 = vmatprep.subr.mxu0 0.0
    %744 = vmatpush1.msra.mxu0 0.0
    %745 = vmatprep.subr.mxu0 0.0
    %746 = vmatpush1.msra.mxu0 0.0
    %747 = vmatprep.subr.mxu0 0.0
    %748 = vmatpush1.msra.mxu0 0.0
    %749 = vmatprep.subr.mxu0 0.0
    %750 = vmatpush1.msra.mxu0 0.0
    %751 = vmatprep.subr.mxu0 0.0
    %752 = vmatpush1.msra.mxu0 0.0
    %753 = vmatprep.subr.mxu0 0.0
    %754 = vmatpush1.msra.mxu0 0.0
    %755 = vmatprep.subr.mxu0 0.0
    %756 = vmatpush1.msra.mxu0 0.0
    %757 = vmatprep.subr.mxu0 0.0
    %758 = vmatpush1.msra.mxu0 0.0
    %759 = vmatprep.subr.mxu0 0.0
    %760 = vmatpush1.msra.mxu0 0.0
    %761 = vmatprep.mubr.f32.mxu0 0.0
    %762 = vmatmul.mubr.f32.gmra.mrb[0].mxu0 %v673
    %v763 = vpop.f32.mrb[0].mxu0
    %v764 = vadd.f32 %v695, %v763
    %v765 = vpop.f32.mrb[0].mxu0
    %766 = vdwg.mxu0
    %v767 = vmax.f32 %v764, 0.0
    %v768 = vand.u32 2147483647, %v764
    %v769 = vsub.f32 0.0, %v768
    %v770 = vmul.f32 %v769, 1.442695
    %v771 = vpow.pop %v770
    %v772 = vadd.f32 %v771, 1.0
    %v773 = vlog2.pop %v772
    %v774 = vmul.f32 %v773, 0.6931472
    %v775 = vmul.f32 -0.5, %v771
    %v776 = vadd.f32 %v775, 1.0
    %v777 = vmul.f32 %v776, %v771
    %v778 = vand.u32 2147483647, %v771
    %vm779 = vcmp.lt.f32.partialorder %v778, 0.0004427343
    %v780 = vsel %vm779, %v777, %v774
    %v781 = vadd.f32 %v767, %v780
    %v782 = vlaneseq
    %v783 = vand.u32 %v782, 127
    %vm784 = vcmp.ge.s32.totalorder %v783, 6
    %vm785 = vcmp.lt.s32.totalorder %v783, 12
    %vm786 = vmand %vm784, %vm785
    %v787 = vsel %vm786, 1, 0
    %vm788 = vcmp.eq.s32.totalorder %v787, 1
    %v789 = vsel %vm788, %v781, %v764
    %790 = vst [vmem:[#allocation11] sm:$0xff] %v789
    // Predicated region
    $region58: #{tpu_custom_call.1} parent=1 // pred_check
      _
    $region59: #{tpu_custom_call.1} parent=1 // pred_check_branch
      %792 = sbr.rel (0) target = $region61
    $region60: #{tpu_custom_call.1} parent=1 // pred_region
      %s794 = ssub.s32 128, 128
      %795 = vsyncadd [#allocation4], %s794
      %s797 = sshll.u32 [#allocation11], 4
      %s798 = int_to_ptr.vmem [resolvable:$true] %s797
      %800 = dma.vmem_to_hbm [thread:$0]  %s798, 128, %s9, [#allocation4]
    $region61: #{tpu_custom_call.1} parent=1 // pred_fallthru
      _
    // Predicated region
    $region62: #{tpu_custom_call.1} parent=1 // pred_check
      _
    $region63: #{tpu_custom_call.1} parent=1 // pred_check_branch
      %802 = sbr.rel (0) target = $region65
    $region64: #{tpu_custom_call.1} parent=1 // pred_region
      %803 = dma.done [#allocation4], 128
    $region65: #{tpu_custom_call.1} parent=1 // pred_fallthru
      _
    %804 = vsyncpa [#allocation3], 1
    %805 = vsyncpa [#allocation6], 1
    %806 = vsyncpa [#allocation9], 1
    %807 = vsyncpa [#allocation4], 1

</llo_original>
